<compile_context>
chip_gen: v5e
topology: v5e:2x2
jax: 0.10.0
libtpu: 0.0.40
codegen_flags: <defaults>
</compile_context>

<pallas_src>
import functools

import jax
import jax.numpy as jnp
from jax import lax
from jax.experimental import pallas as pl
from jax.experimental.pallas import tpu as pltpu


# -----------------------------------------------------------------------------
# Kernel 1: per (caption-tile, image-tile) scores.
# -----------------------------------------------------------------------------
def _scores_kernel(scale_ref, txt_ref, img_ref, sp_ref, st_ref, *,
                   tile_captions, num_tokens, tile_images, num_patches):
    tc, t, ti, p = tile_captions, num_tokens, tile_images, num_patches
    scale = scale_ref[0]

    t_emb = txt_ref[...]                                   # (TC*T, D) bf16

    sp_cols = []
    st_cols = []
    # One matmul per image keeps the sim tile's lane axis exactly P (never an
    # arbitrary I*P split): sum-over-P is a contiguous full-lane reduce and
    # max-over-T is a sublane-only row split.  TI is static -> unrolled.
    for j in range(ti):
        img_j = img_ref[pl.ds(j * p, p), :]                # (P, D) bf16
        sim = lax.dot_general(                             # (TC*T, P), f32 acc
            t_emb, img_j,
            dimension_numbers=(((1,), (1,)), ((), ())),
            preferred_element_type=jnp.float32)
        sim3 = sim.reshape(tc, t, p)                       # (TC, T, P)
        # score_p[c] = sum_p max_t sim ;  score_t[c] = sum_t max_p sim
        sp_cols.append(jnp.sum(jnp.max(sim3, axis=1), axis=-1, keepdims=True))
        st_cols.append(jnp.sum(jnp.max(sim3, axis=2), axis=-1, keepdims=True))

    # logit_scale = exp(param) > 0, so scaling commutes with the maxes; apply it
    # once on the tiny (TC, TI) blocks instead of on every (TC*T, P) sim tile.
    sp_ref[...] = jnp.concatenate(sp_cols, axis=1) * scale
    st_ref[...] = jnp.concatenate(st_cols, axis=1) * scale


def _k1_vmem_need_bytes(tc, t, ti, p, d, in_bytes):
    """Rough per-grid-step VMEM footprint (double-buffered blocks + live sim)."""
    lane = -(-p // 128) * 128
    sub = -(-(tc * t) // 8) * 8
    text_blk = tc * t * d * in_bytes
    img_blk = ti * p * d * in_bytes
    out_blk = tc * ti * 4
    sim_live = sub * lane * 4
    return 2 * text_blk + 2 * img_blk + 4 * out_blk + 3 * sim_live


def _select_tiles(C, T, I, P, D, in_bytes, budget_bytes=36 * 1024 * 1024):
    """Pick (TC, TI) from a VMEM byte budget (v7x-safe: <= ~36 MiB per step)."""
    # Image tile: a multiple of 128 keeps the (TC, TI) output stores lane-dense
    # (unmasked vst); otherwise the only legal choice is the full image dim.
    ti_opts = sorted(d for d in range(128, I + 1, 128) if I % d == 0) or [I]
    # Caption tile: multiples of 8 keep text/output blocks sublane aligned.
    # Prefer the largest TC that fits the budget so the image stream is re-read
    # as few times as possible (matters most on v5e's HBM bandwidth).
    tc_opts = sorted((d for d in range(8, C + 1, 8) if C % d == 0),
                     reverse=True) or [C]
    for ti in ti_opts:                    # smallest lane-dense image tile first
        for tc in tc_opts:                # largest caption tile first
            if _k1_vmem_need_bytes(tc, T, ti, P, D, in_bytes) <= budget_bytes:
                return tc, ti
    return tc_opts[-1], ti_opts[0]        # degenerate fallback (tiny problems)


def colbert_scores(text_embeddings, image_embeddings, logit_scale):
    C, T, D = text_embeddings.shape
    I, P, _ = image_embeddings.shape

    # bf16 MXU feeds (f32 accumulate): several-x faster on the 256x256 MXU of
    # v6e/v7x and halves HBM/VMEM traffic; L2-normalized sims tolerate bf16.
    cdt = jnp.bfloat16 if text_embeddings.dtype == jnp.float32 else text_embeddings.dtype
    in_bytes = jnp.dtype(cdt).itemsize

    TC, TI = _select_tiles(C, T, I, P, D, in_bytes)
    need = _k1_vmem_need_bytes(TC, T, TI, P, D, in_bytes)
    vmem_limit = int(min(max(need * 3 // 2, 8 * 1024 * 1024), 40 * 1024 * 1024))

    # Wrapper-side reshapes are contiguous leading-dim merges (free); the cast
    # halves the bytes the pipeline has to DMA.
    txt2 = text_embeddings.reshape(C * T, D).astype(cdt)
    img2 = image_embeddings.reshape(I * P, D).astype(cdt)
    scale_arr = jnp.reshape(jnp.asarray(logit_scale, jnp.float32), (1,))

    kernel = functools.partial(
        _scores_kernel,
        tile_captions=TC, num_tokens=T, tile_images=TI, num_patches=P)

    grid_spec = pltpu.PrefetchScalarGridSpec(
        num_scalar_prefetch=1,
        grid=(C // TC, I // TI),
        in_specs=[
            pl.BlockSpec((TC * T, D), lambda c, i, s: (c, 0)),   # caption tile
            # Image tiles stream along the fast grid axis for a fixed caption
            # tile.  TODO(synk): if the image-stream DMA is still exposed on
            # v5e, deepen to pipeline_mode=pl.Buffered(3).
            pl.BlockSpec((TI * P, D), lambda c, i, s: (i, 0)),
        ],
        out_specs=[
            pl.BlockSpec((TC, TI), lambda c, i, s: (c, i)),
            pl.BlockSpec((TC, TI), lambda c, i, s: (c, i)),
        ],
    )
    score_p, score_t = pl.pallas_call(
        kernel,
        grid_spec=grid_spec,
        out_shape=(jax.ShapeDtypeStruct((C, I), jnp.float32),
                   jax.ShapeDtypeStruct((C, I), jnp.float32)),
        compiler_params=pltpu.CompilerParams(
            dimension_semantics=("parallel", "parallel"),
            vmem_limit_bytes=vmem_limit),
    )(scale_arr, txt2, img2)
    return score_p, score_t


# -----------------------------------------------------------------------------
# Kernel 2: distillation logits + similarity + the 4+4 loss streams.
# -----------------------------------------------------------------------------
def _loss_kernel(dscale_ref, sp_ref, st_ref, di_ref, dt_ref,
                 closs_ref, dloss_ref):
    dscale = dscale_ref[0]
    n = sp_ref.shape[0]

    di = di_ref[...]                                       # (N, D2)
    dt = dt_ref[...]                                       # (N, D2)

    # All three matmuls contract dim1 x dim1 — no MXU-side operand transposes.
    lpi = dscale * lax.dot_general(di, dt, (((1,), (1,)), ((), ())),
                                   preferred_element_type=jnp.float32)   # [i, c]
    lpt = dscale * lax.dot_general(dt, di, (((1,), (1,)), ((), ())),
                                   preferred_element_type=jnp.float32)   # [c, i]
    # distill_similarity[c, i] = <logits_per_text[c, :], logits_per_image[i, :]>
    dsim = lax.dot_general(lpt, lpi, (((1,), (1,)), ((), ())),
                           preferred_element_type=jnp.float32)           # [c, i]

    sp = sp_ref[...]
    st = st_ref[...]

    def ssum(x):                                           # full sum -> (1, 1)
        return jnp.sum(jnp.sum(x, axis=0, keepdims=True), axis=1, keepdims=True)

    # Diagonal sums (shared by the image-wise and text-wise streams): built once.
    row = lax.broadcasted_iota(jnp.int32, (n, n), 0)
    col = lax.broadcasted_iota(jnp.int32, (n, n), 1)
    diag = row == col
    trace_sp = ssum(jnp.where(diag, sp, 0.0))
    trace_st = ssum(jnp.where(diag, st, 0.0))

    def softmax(x, axis):
        m = jnp.max(x, axis=axis, keepdims=True)
        e = jnp.exp(x - m)
        return e / jnp.sum(e, axis=axis, keepdims=True)

    def logsumexp(x, axis):
        m = jnp.max(x, axis=axis, keepdims=True)
        return m + jnp.log(jnp.sum(jnp.exp(x - m), axis=axis, keepdims=True))

    # -log(softmax(x)+eps) in logsumexp form:
    #   contrastive stream = (1/N) * (sum_j lse_j - trace(x))
    #   distill stream     = (1/N) * (sum_j lse_j - sum(dsm * x))
    # (dsm columns/rows sum to 1); 4*N logs instead of 4*N^2, no N^2 neg_log
    # arrays.  The reference's +1e-8 inside the log is dropped (<=1e-8 shift).
    closs = jnp.zeros((1, 1), jnp.float32)
    dloss = jnp.zeros((1, 1), jnp.float32)
    for axis in (0, 1):                              # image-wise, then text-wise
        dsm = softmax(dsim, axis)
        for score, tr in ((sp, trace_sp), (st, trace_st)):   # patch-, token-wise
            lse_sum = ssum(logsumexp(score, axis))
            closs = closs + (lse_sum - tr)
            dloss = dloss + (lse_sum - ssum(dsm * score))

    inv = 0.25 / n                      # mean over 4 streams, each divided by N
    closs_ref[...] = closs * inv
    dloss_ref[...] = dloss * inv


def colbert_losses(score_p, score_t, dist_image_features, dist_text_features,
                   dist_logit_scale):
    N, N2 = score_p.shape
    assert N == N2, "ColbertDistillClipLoss requires #captions == #images"
    D2 = dist_image_features.shape[1]
    dscale_arr = jnp.reshape(jnp.asarray(dist_logit_scale, jnp.float32), (1,))

    # TODO(synk): row/column-tile this kernel with a streamed softmax once the
    # global batch reaches a few thousand; all (N, N) blocks are resident here.
    need = (2 * (2 * N * N + 2 * N * D2) + 12 * N * N) * 4
    vmem_limit = int(min(max(need * 2, 8 * 1024 * 1024), 40 * 1024 * 1024))

    grid_spec = pltpu.PrefetchScalarGridSpec(
        num_scalar_prefetch=1,
        grid=(1,),
        in_specs=[
            pl.BlockSpec((N, N), lambda i, s: (0, 0)),
            pl.BlockSpec((N, N), lambda i, s: (0, 0)),
            pl.BlockSpec((N, D2), lambda i, s: (0, 0)),
            pl.BlockSpec((N, D2), lambda i, s: (0, 0)),
        ],
        out_specs=[
            pl.BlockSpec((1, 1), lambda i, s: (0, 0)),
            pl.BlockSpec((1, 1), lambda i, s: (0, 0)),
        ],
    )
    closs, dloss = pl.pallas_call(
        _loss_kernel,
        grid_spec=grid_spec,
        out_shape=(jax.ShapeDtypeStruct((1, 1), jnp.float32),
                   jax.ShapeDtypeStruct((1, 1), jnp.float32)),
        compiler_params=pltpu.CompilerParams(
            dimension_semantics=("arbitrary",),
            vmem_limit_bytes=vmem_limit),
    )(dscale_arr, score_p, score_t, dist_image_features, dist_text_features)
    return closs[0, 0], dloss[0, 0]


# -----------------------------------------------------------------------------
# Wrapper == ColbertDistillClipLoss.forward (world_size=1, dropout=0,
# global_contrastive='all', local_contrastive='all').
# -----------------------------------------------------------------------------
def colbert_distill_clip_loss(image_features, text_features,
                              image_embeddings, text_embeddings,
                              dist_image_features, dist_text_features,
                              dist_logit_scale, logit_scale,
                              include_contrastive=False):
    # image_features / text_features are unused by the reference forward
    # (only the dist_* features participate); kept for signature fidelity.
    del image_features, text_features
    # TODO(synk): world_size > 1 all-gather (gather_features/gather_embeddings)
    # is a distributed collective and is out of scope for this single-device kernel.
    score_p, score_t = colbert_scores(text_embeddings, image_embeddings, logit_scale)
    contrastive_loss, distill_loss = colbert_losses(
        score_p, score_t, dist_image_features, dist_text_features, dist_logit_scale)
    if include_contrastive:
        return contrastive_loss, distill_loss
    return distill_loss


# -----------------------------------------------------------------------------
# Pure-JAX reference (mirrors the PyTorch code) for a correctness check.
# -----------------------------------------------------------------------------
def reference_loss(image_embeddings, text_embeddings,
                   dist_image_features, dist_text_features,
                   dist_logit_scale, logit_scale):
    eps = 1e-8
    lpi = dist_logit_scale * dist_image_features @ dist_text_features.T
    lpt = dist_logit_scale * dist_text_features @ dist_image_features.T
    similarity = jnp.einsum('ctd,ipd->citp', text_embeddings, image_embeddings) * logit_scale
    dsim = jnp.einsum('cd,id->ci', lpt, lpi)

    score_p = jnp.max(similarity, axis=2).sum(axis=-1)
    score_t = jnp.max(similarity, axis=3).sum(axis=-1)

    closs_streams, dloss_streams = [], []
    for score in (score_p, score_t):
        sm = jax.nn.softmax(score, axis=0)
        closs_streams.append(-jnp.mean(jnp.log(jnp.diagonal(sm) + eps)))
        dsm = jax.nn.softmax(dsim, axis=0)
        dloss_streams.append(jnp.mean(jnp.sum(dsm * -jnp.log(sm + eps), axis=0)))
    for score in (score_p, score_t):
        sm = jax.nn.softmax(score, axis=1)
        closs_streams.append(-jnp.mean(jnp.log(jnp.diagonal(sm) + eps)))
        dsm = jax.nn.softmax(dsim, axis=1)
        dloss_streams.append(jnp.mean(jnp.sum(dsm * -jnp.log(sm + eps), axis=1)))
    return jnp.mean(jnp.stack(closs_streams)), jnp.mean(jnp.stack(dloss_streams))


def _l2norm(x):
    return x / jnp.linalg.norm(x, axis=-1, keepdims=True)


if __name__ == "__main__":
    key = jax.random.PRNGKey(0)
    k1, k2, k3, k4 = jax.random.split(key, 4)

    N = 8          # batch (captions == images, required by the module's diag/einsum)
    T = 8          # text tokens
    P = 16         # image patches
    D = 32         # colbert embedding dim
    D2 = 32        # distillation feature dim

    image_embeddings = _l2norm(jax.random.normal(k1, (N, P, D), jnp.float32))
    text_embeddings = _l2norm(jax.random.normal(k2, (N, T, D), jnp.float32))
    dist_image_features = _l2norm(jax.random.normal(k3, (N, D2), jnp.float32))
    dist_text_features = _l2norm(jax.random.normal(k4, (N, D2), jnp.float32))
    image_features = dist_image_features   # unused in forward
    text_features = dist_text_features     # unused in forward

    logit_scale = jnp.float32(2.5)
    dist_logit_scale = jnp.float32(2.5)

    contrastive_loss, distill_loss = colbert_distill_clip_loss(
        image_features, text_features,
        image_embeddings, text_embeddings,
        dist_image_features, dist_text_features,
        dist_logit_scale, logit_scale,
        include_contrastive=True)
    contrastive_loss = jax.block_until_ready(contrastive_loss)
    distill_loss = jax.block_until_ready(distill_loss)

    ref_c, ref_d = reference_loss(image_embeddings, text_embeddings,
                                  dist_image_features, dist_text_features,
                                  dist_logit_scale, logit_scale)
    ref_c = float(jax.block_until_ready(ref_c))
    ref_d = float(jax.block_until_ready(ref_d))

    def close(a, b, tol=2e-2):
        return abs(a - b) <= tol * (1.0 + abs(b))

    assert close(float(contrastive_loss), ref_c), (float(contrastive_loss), ref_c)
    assert close(float(distill_loss), ref_d), (float(distill_loss), ref_d)

    print("KERNEL_OK")
</pallas_src>

<mosaic_0001>
module attributes {stable_mosaic.version = 11 : i64} {
  func.func @_scores_kernel(%arg0: i32, %arg1: i32, %arg2: memref<1xf32, #tpu.memory_space<smem>>, %arg3: memref<64x32xbf16, #tpu.memory_space<vmem>>, %arg4: memref<128x32xbf16, #tpu.memory_space<vmem>>, %arg5: memref<8x8xf32, #tpu.memory_space<vmem>>, %arg6: memref<8x8xf32, #tpu.memory_space<vmem>>) attributes {dimension_semantics = [#tpu.dimension_semantics<parallel>, #tpu.dimension_semantics<parallel>], iteration_bounds = array<i64: 1, 1>, scalar_prefetch = 1 : i64, scratch_operands = 0 : i64, tpu.core_type = #tpu.core_type<tc>, window_params = [{transform_indices = @transform_0, window_bounds = array<i64: 64, 32>}, {transform_indices = @transform_1, window_bounds = array<i64: 128, 32>}, {transform_indices = @transform_2, window_bounds = array<i64: 8, 8>}, {transform_indices = @transform_3, window_bounds = array<i64: 8, 8>}]} {
    %c0 = arith.constant 0 : index
    %0 = memref.load %arg2[%c0] : memref<1xf32, #tpu.memory_space<smem>>
    %c0_0 = arith.constant 0 : index
    %c0_1 = arith.constant 0 : index
    %1 = vector.load %arg3[%c0_0, %c0_1] : memref<64x32xbf16, #tpu.memory_space<vmem>>, vector<64x32xbf16>
    %c0_2 = arith.constant 0 : index
    %c0_3 = arith.constant 0 : index
    %2 = vector.load %arg4[%c0_2, %c0_3] : memref<128x32xbf16, #tpu.memory_space<vmem>>, vector<16x32xbf16>
    %cst = arith.constant dense<0.000000e+00> : vector<64x16xf32>
    %3 = tpu.matmul %1, %2, %cst {dimension_numbers = #tpu.dot_dimension_numbers<[1], [1], [0], [0], [0, 0, 1, 0], [], []>} : vector<64x32xbf16>, vector<16x32xbf16>, vector<64x16xf32> -> vector<64x16xf32>
    %4 = vector.shape_cast %3 : vector<64x16xf32> to vector<8x8x16xf32>
    %cst_4 = arith.constant dense<0xFF800000> : vector<8x16xf32>
    %5 = vector.multi_reduction <maximumf>, %4, %cst_4 [1] : vector<8x8x16xf32> to vector<8x16xf32>
    %cst_5 = arith.constant dense<0.000000e+00> : vector<8xf32>
    %6 = vector.multi_reduction <add>, %5, %cst_5 [1] : vector<8x16xf32> to vector<8xf32>
    %7 = vector.shape_cast %6 : vector<8xf32> to vector<8x1xf32>
    %cst_6 = arith.constant dense<0xFF800000> : vector<8x8xf32>
    %8 = vector.multi_reduction <maximumf>, %4, %cst_6 [2] : vector<8x8x16xf32> to vector<8x8xf32>
    %cst_7 = arith.constant dense<0.000000e+00> : vector<8xf32>
    %9 = vector.multi_reduction <add>, %8, %cst_7 [1] : vector<8x8xf32> to vector<8xf32>
    %10 = vector.shape_cast %9 : vector<8xf32> to vector<8x1xf32>
    %c16 = arith.constant 16 : index
    %c0_8 = arith.constant 0 : index
    %11 = vector.load %arg4[%c16, %c0_8] : memref<128x32xbf16, #tpu.memory_space<vmem>>, vector<16x32xbf16>
    %cst_9 = arith.constant dense<0.000000e+00> : vector<64x16xf32>
    %12 = tpu.matmul %1, %11, %cst_9 {dimension_numbers = #tpu.dot_dimension_numbers<[1], [1], [0], [0], [0, 0, 1, 0], [], []>} : vector<64x32xbf16>, vector<16x32xbf16>, vector<64x16xf32> -> vector<64x16xf32>
    %13 = vector.shape_cast %12 : vector<64x16xf32> to vector<8x8x16xf32>
    %cst_10 = arith.constant dense<0xFF800000> : vector<8x16xf32>
    %14 = vector.multi_reduction <maximumf>, %13, %cst_10 [1] : vector<8x8x16xf32> to vector<8x16xf32>
    %cst_11 = arith.constant dense<0.000000e+00> : vector<8xf32>
    %15 = vector.multi_reduction <add>, %14, %cst_11 [1] : vector<8x16xf32> to vector<8xf32>
    %16 = vector.shape_cast %15 : vector<8xf32> to vector<8x1xf32>
    %cst_12 = arith.constant dense<0xFF800000> : vector<8x8xf32>
    %17 = vector.multi_reduction <maximumf>, %13, %cst_12 [2] : vector<8x8x16xf32> to vector<8x8xf32>
    %cst_13 = arith.constant dense<0.000000e+00> : vector<8xf32>
    %18 = vector.multi_reduction <add>, %17, %cst_13 [1] : vector<8x8xf32> to vector<8xf32>
    %19 = vector.shape_cast %18 : vector<8xf32> to vector<8x1xf32>
    %c32 = arith.constant 32 : index
    %c0_14 = arith.constant 0 : index
    %20 = vector.load %arg4[%c32, %c0_14] : memref<128x32xbf16, #tpu.memory_space<vmem>>, vector<16x32xbf16>
    %cst_15 = arith.constant dense<0.000000e+00> : vector<64x16xf32>
    %21 = tpu.matmul %1, %20, %cst_15 {dimension_numbers = #tpu.dot_dimension_numbers<[1], [1], [0], [0], [0, 0, 1, 0], [], []>} : vector<64x32xbf16>, vector<16x32xbf16>, vector<64x16xf32> -> vector<64x16xf32>
    %22 = vector.shape_cast %21 : vector<64x16xf32> to vector<8x8x16xf32>
    %cst_16 = arith.constant dense<0xFF800000> : vector<8x16xf32>
    %23 = vector.multi_reduction <maximumf>, %22, %cst_16 [1] : vector<8x8x16xf32> to vector<8x16xf32>
    %cst_17 = arith.constant dense<0.000000e+00> : vector<8xf32>
    %24 = vector.multi_reduction <add>, %23, %cst_17 [1] : vector<8x16xf32> to vector<8xf32>
    %25 = vector.shape_cast %24 : vector<8xf32> to vector<8x1xf32>
    %cst_18 = arith.constant dense<0xFF800000> : vector<8x8xf32>
    %26 = vector.multi_reduction <maximumf>, %22, %cst_18 [2] : vector<8x8x16xf32> to vector<8x8xf32>
    %cst_19 = arith.constant dense<0.000000e+00> : vector<8xf32>
    %27 = vector.multi_reduction <add>, %26, %cst_19 [1] : vector<8x8xf32> to vector<8xf32>
    %28 = vector.shape_cast %27 : vector<8xf32> to vector<8x1xf32>
    %c48 = arith.constant 48 : index
    %c0_20 = arith.constant 0 : index
    %29 = vector.load %arg4[%c48, %c0_20] : memref<128x32xbf16, #tpu.memory_space<vmem>>, vector<16x32xbf16>
    %cst_21 = arith.constant dense<0.000000e+00> : vector<64x16xf32>
    %30 = tpu.matmul %1, %29, %cst_21 {dimension_numbers = #tpu.dot_dimension_numbers<[1], [1], [0], [0], [0, 0, 1, 0], [], []>} : vector<64x32xbf16>, vector<16x32xbf16>, vector<64x16xf32> -> vector<64x16xf32>
    %31 = vector.shape_cast %30 : vector<64x16xf32> to vector<8x8x16xf32>
    %cst_22 = arith.constant dense<0xFF800000> : vector<8x16xf32>
    %32 = vector.multi_reduction <maximumf>, %31, %cst_22 [1] : vector<8x8x16xf32> to vector<8x16xf32>
    %cst_23 = arith.constant dense<0.000000e+00> : vector<8xf32>
    %33 = vector.multi_reduction <add>, %32, %cst_23 [1] : vector<8x16xf32> to vector<8xf32>
    %34 = vector.shape_cast %33 : vector<8xf32> to vector<8x1xf32>
    %cst_24 = arith.constant dense<0xFF800000> : vector<8x8xf32>
    %35 = vector.multi_reduction <maximumf>, %31, %cst_24 [2] : vector<8x8x16xf32> to vector<8x8xf32>
    %cst_25 = arith.constant dense<0.000000e+00> : vector<8xf32>
    %36 = vector.multi_reduction <add>, %35, %cst_25 [1] : vector<8x8xf32> to vector<8xf32>
    %37 = vector.shape_cast %36 : vector<8xf32> to vector<8x1xf32>
    %c64 = arith.constant 64 : index
    %c0_26 = arith.constant 0 : index
    %38 = vector.load %arg4[%c64, %c0_26] : memref<128x32xbf16, #tpu.memory_space<vmem>>, vector<16x32xbf16>
    %cst_27 = arith.constant dense<0.000000e+00> : vector<64x16xf32>
    %39 = tpu.matmul %1, %38, %cst_27 {dimension_numbers = #tpu.dot_dimension_numbers<[1], [1], [0], [0], [0, 0, 1, 0], [], []>} : vector<64x32xbf16>, vector<16x32xbf16>, vector<64x16xf32> -> vector<64x16xf32>
    %40 = vector.shape_cast %39 : vector<64x16xf32> to vector<8x8x16xf32>
    %cst_28 = arith.constant dense<0xFF800000> : vector<8x16xf32>
    %41 = vector.multi_reduction <maximumf>, %40, %cst_28 [1] : vector<8x8x16xf32> to vector<8x16xf32>
    %cst_29 = arith.constant dense<0.000000e+00> : vector<8xf32>
    %42 = vector.multi_reduction <add>, %41, %cst_29 [1] : vector<8x16xf32> to vector<8xf32>
    %43 = vector.shape_cast %42 : vector<8xf32> to vector<8x1xf32>
    %cst_30 = arith.constant dense<0xFF800000> : vector<8x8xf32>
    %44 = vector.multi_reduction <maximumf>, %40, %cst_30 [2] : vector<8x8x16xf32> to vector<8x8xf32>
    %cst_31 = arith.constant dense<0.000000e+00> : vector<8xf32>
    %45 = vector.multi_reduction <add>, %44, %cst_31 [1] : vector<8x8xf32> to vector<8xf32>
    %46 = vector.shape_cast %45 : vector<8xf32> to vector<8x1xf32>
    %c80 = arith.constant 80 : index
    %c0_32 = arith.constant 0 : index
    %47 = vector.load %arg4[%c80, %c0_32] : memref<128x32xbf16, #tpu.memory_space<vmem>>, vector<16x32xbf16>
    %cst_33 = arith.constant dense<0.000000e+00> : vector<64x16xf32>
    %48 = tpu.matmul %1, %47, %cst_33 {dimension_numbers = #tpu.dot_dimension_numbers<[1], [1], [0], [0], [0, 0, 1, 0], [], []>} : vector<64x32xbf16>, vector<16x32xbf16>, vector<64x16xf32> -> vector<64x16xf32>
    %49 = vector.shape_cast %48 : vector<64x16xf32> to vector<8x8x16xf32>
    %cst_34 = arith.constant dense<0xFF800000> : vector<8x16xf32>
    %50 = vector.multi_reduction <maximumf>, %49, %cst_34 [1] : vector<8x8x16xf32> to vector<8x16xf32>
    %cst_35 = arith.constant dense<0.000000e+00> : vector<8xf32>
    %51 = vector.multi_reduction <add>, %50, %cst_35 [1] : vector<8x16xf32> to vector<8xf32>
    %52 = vector.shape_cast %51 : vector<8xf32> to vector<8x1xf32>
    %cst_36 = arith.constant dense<0xFF800000> : vector<8x8xf32>
    %53 = vector.multi_reduction <maximumf>, %49, %cst_36 [2] : vector<8x8x16xf32> to vector<8x8xf32>
    %cst_37 = arith.constant dense<0.000000e+00> : vector<8xf32>
    %54 = vector.multi_reduction <add>, %53, %cst_37 [1] : vector<8x8xf32> to vector<8xf32>
    %55 = vector.shape_cast %54 : vector<8xf32> to vector<8x1xf32>
    %c96 = arith.constant 96 : index
    %c0_38 = arith.constant 0 : index
    %56 = vector.load %arg4[%c96, %c0_38] : memref<128x32xbf16, #tpu.memory_space<vmem>>, vector<16x32xbf16>
    %cst_39 = arith.constant dense<0.000000e+00> : vector<64x16xf32>
    %57 = tpu.matmul %1, %56, %cst_39 {dimension_numbers = #tpu.dot_dimension_numbers<[1], [1], [0], [0], [0, 0, 1, 0], [], []>} : vector<64x32xbf16>, vector<16x32xbf16>, vector<64x16xf32> -> vector<64x16xf32>
    %58 = vector.shape_cast %57 : vector<64x16xf32> to vector<8x8x16xf32>
    %cst_40 = arith.constant dense<0xFF800000> : vector<8x16xf32>
    %59 = vector.multi_reduction <maximumf>, %58, %cst_40 [1] : vector<8x8x16xf32> to vector<8x16xf32>
    %cst_41 = arith.constant dense<0.000000e+00> : vector<8xf32>
    %60 = vector.multi_reduction <add>, %59, %cst_41 [1] : vector<8x16xf32> to vector<8xf32>
    %61 = vector.shape_cast %60 : vector<8xf32> to vector<8x1xf32>
    %cst_42 = arith.constant dense<0xFF800000> : vector<8x8xf32>
    %62 = vector.multi_reduction <maximumf>, %58, %cst_42 [2] : vector<8x8x16xf32> to vector<8x8xf32>
    %cst_43 = arith.constant dense<0.000000e+00> : vector<8xf32>
    %63 = vector.multi_reduction <add>, %62, %cst_43 [1] : vector<8x8xf32> to vector<8xf32>
    %64 = vector.shape_cast %63 : vector<8xf32> to vector<8x1xf32>
    %c112 = arith.constant 112 : index
    %c0_44 = arith.constant 0 : index
    %65 = vector.load %arg4[%c112, %c0_44] : memref<128x32xbf16, #tpu.memory_space<vmem>>, vector<16x32xbf16>
    %cst_45 = arith.constant dense<0.000000e+00> : vector<64x16xf32>
    %66 = tpu.matmul %1, %65, %cst_45 {dimension_numbers = #tpu.dot_dimension_numbers<[1], [1], [0], [0], [0, 0, 1, 0], [], []>} : vector<64x32xbf16>, vector<16x32xbf16>, vector<64x16xf32> -> vector<64x16xf32>
    %67 = vector.shape_cast %66 : vector<64x16xf32> to vector<8x8x16xf32>
    %cst_46 = arith.constant dense<0xFF800000> : vector<8x16xf32>
    %68 = vector.multi_reduction <maximumf>, %67, %cst_46 [1] : vector<8x8x16xf32> to vector<8x16xf32>
    %cst_47 = arith.constant dense<0.000000e+00> : vector<8xf32>
    %69 = vector.multi_reduction <add>, %68, %cst_47 [1] : vector<8x16xf32> to vector<8xf32>
    %70 = vector.shape_cast %69 : vector<8xf32> to vector<8x1xf32>
    %cst_48 = arith.constant dense<0xFF800000> : vector<8x8xf32>
    %71 = vector.multi_reduction <maximumf>, %67, %cst_48 [2] : vector<8x8x16xf32> to vector<8x8xf32>
    %cst_49 = arith.constant dense<0.000000e+00> : vector<8xf32>
    %72 = vector.multi_reduction <add>, %71, %cst_49 [1] : vector<8x8xf32> to vector<8xf32>
    %73 = vector.shape_cast %72 : vector<8xf32> to vector<8x1xf32>
    %74 = tpu.concatenate %7, %16, %25, %34, %43, %52, %61, %70 in 1 : vector<8x1xf32>, vector<8x1xf32>, vector<8x1xf32>, vector<8x1xf32>, vector<8x1xf32>, vector<8x1xf32>, vector<8x1xf32>, vector<8x1xf32> -> vector<8x8xf32>
    %75 = vector.broadcast %0 : f32 to vector<8x8xf32>
    %76 = arith.mulf %74, %75 : vector<8x8xf32>
    %c0_50 = arith.constant 0 : index
    %c0_51 = arith.constant 0 : index
    %77 = vector.load %arg5[%c0_50, %c0_51] : memref<8x8xf32, #tpu.memory_space<vmem>>, vector<8x8xf32>
    tpu.vector_store %arg5[%c0_50, %c0_51], %76 {strides = array<i32>} : memref<8x8xf32, #tpu.memory_space<vmem>>, vector<8x8xf32>,
    %78 = tpu.concatenate %10, %19, %28, %37, %46, %55, %64, %73 in 1 : vector<8x1xf32>, vector<8x1xf32>, vector<8x1xf32>, vector<8x1xf32>, vector<8x1xf32>, vector<8x1xf32>, vector<8x1xf32>, vector<8x1xf32> -> vector<8x8xf32>
    %79 = vector.broadcast %0 : f32 to vector<8x8xf32>
    %80 = arith.mulf %78, %79 : vector<8x8xf32>
    %c0_52 = arith.constant 0 : index
    %c0_53 = arith.constant 0 : index
    %81 = vector.load %arg6[%c0_52, %c0_53] : memref<8x8xf32, #tpu.memory_space<vmem>>, vector<8x8xf32>
    tpu.vector_store %arg6[%c0_52, %c0_53], %80 {strides = array<i32>} : memref<8x8xf32, #tpu.memory_space<vmem>>, vector<8x8xf32>,
    return
  }
  func.func @transform_0(%arg0: i32, %arg1: i32, %arg2: memref<1xf32, #tpu.memory_space<smem>>) -> (i32, i32) {
    %c0_i32 = arith.constant 0 : i32
    %c0_i32_0 = arith.constant 0 : i32
    return %arg0, %c0_i32 : i32, i32
  }
  func.func @transform_1(%arg0: i32, %arg1: i32, %arg2: memref<1xf32, #tpu.memory_space<smem>>) -> (i32, i32) {
    %c0_i32 = arith.constant 0 : i32
    %c0_i32_0 = arith.constant 0 : i32
    return %arg1, %c0_i32 : i32, i32
  }
  func.func @transform_2(%arg0: i32, %arg1: i32, %arg2: memref<1xf32, #tpu.memory_space<smem>>) -> (i32, i32) {
    %c0_i32 = arith.constant 0 : i32
    return %arg0, %arg1 : i32, i32
  }
  func.func @transform_3(%arg0: i32, %arg1: i32, %arg2: memref<1xf32, #tpu.memory_space<smem>>) -> (i32, i32) {
    %c0_i32 = arith.constant 0 : i32
    return %arg0, %arg1 : i32, i32
  }
}

</mosaic_0001>

<llo_original>
// kernel: tpu_custom_call.1
$region0: #{tpu_custom_call.1}
  #allocation0 [shape = 'u32[]', space=smem, size = 0x4, offset = 0x4, fixed_abs, tag = 'smem constant byte address 0x4 - core index']
  #allocation1 [shape = 'u32[72,128]{1,0:T(1,128)}', space=vmem, size = 0x9000, scoped, tag = 'internal scratch']
  #allocation2 [shape = 's32[1]{0}', space=sflag, size = 0x4, scoped, tag = 'scoped memory for tpu_custom_call.1']
  #allocation3 [shape = 'f32[1]{0:T(128)S(6)}', space=smem, size = 0x200, scoped, tag = 'prefetched SMEM operand 0']
  %s0 = inlined_call_operand.<no memory space> [shape: f32[1], index: 0, kind: input, shape index: {}]
  %s1 = inlined_call_operand.vmem [shape: bf16[64,32], index: 1, kind: input, shape index: {}]
  %s2 = inlined_call_operand.vmem [shape: bf16[128,32], index: 2, kind: input, shape index: {}]
  %s3 = inlined_call_operand.hbm [shape: f32[8,8], index: 3, kind: output, shape index: {0}]
  %s4 = inlined_call_operand.hbm [shape: f32[8,8], index: 4, kind: output, shape index: {1}]
  %5 = xla_tuple %s3, %s4
  %s6 = sld [smem:[#allocation0]]
  $region26: #{tpu_custom_call.1} parent=0
    _
  %s8 = ssub.s32 1, %s6
  %s9 = scalar_select 0, %s8, %s6
  %10 = sst [smem:[#allocation3]] %s0
  $region1: #{tpu_custom_call.1} parent=0
    #allocation4 [shape = 'u8[4096]{0}', space=vmem, size = 0x1000, scoped, tag = 'output window, operand 0, single buffered']
    #allocation5 [shape = 's32[1]{0}', space=sflag, size = 0x4, scoped, tag = 'scoped memory for tpu_custom_call.1']
    #allocation6 [shape = 'u8[4096]{0}', space=vmem, size = 0x1000, scoped, tag = 'output window, operand 1, single buffered']
    #allocation7 [shape = 's32[1]{0}', space=sflag, size = 0x4, scoped, tag = 'scoped memory for tpu_custom_call.1']
    %11 = vsyncpa [#allocation5], 0
    %12 = vsyncpa [#allocation7], 0
    // Predicated region
    $region2: #{tpu_custom_call.1} parent=1 // pred_check
      _
    $region3: #{tpu_custom_call.1} parent=1 // pred_check_branch
      %14 = sbr.rel (0) target = $region5
    $region4: #{tpu_custom_call.1} parent=1 // pred_region
      _
    $region5: #{tpu_custom_call.1} parent=1 // pred_fallthru
      _
    // Predicated region
    $region6: #{tpu_custom_call.1} parent=1 // pred_check
      _
    $region7: #{tpu_custom_call.1} parent=1 // pred_check_branch
      %16 = sbr.rel (0) target = $region9
    $region8: #{tpu_custom_call.1} parent=1 // pred_region
      _
    $region9: #{tpu_custom_call.1} parent=1 // pred_fallthru
      _
    %s18 = sld [smem:[#allocation3]]
    %v19 = vld [vmem:[%s1] sm:$0xf]
    %v20 = vld [vmem:[%s1 + $0x4] sm:$0xf]
    %v21 = vld [vmem:[%s1 + $0x8] sm:$0xf]
    %v22 = vld [vmem:[%s1 + $0xc] sm:$0xf]
    %v23 = vld [vmem:[%s1 + $0x10] sm:$0xf]
    %v24 = vld [vmem:[%s1 + $0x14] sm:$0xf]
    %v25 = vld [vmem:[%s1 + $0x18] sm:$0xf]
    %v26 = vld [vmem:[%s1 + $0x1c] sm:$0xf]
    %v27 = vld [vmem:[%s2] sm:$0xf]
    %v28 = vld [vmem:[%s2 + $0x4] sm:$0xf]
    %v37 = vunpack.c.l.b16 %v19
    %v38 = vunpack.c.l.b16 %v20
    %v39 = vunpack.c.l.b16 %v21
    %v40 = vunpack.c.l.b16 %v22
    %v41 = vunpack.c.l.b16 %v23
    %v42 = vunpack.c.l.b16 %v24
    %v43 = vunpack.c.l.b16 %v25
    %v44 = vunpack.c.l.b16 %v26
    %v45 = vpack.c.b16 %v38, %v37
    %v46 = vpack.c.b16 %v40, %v39
    %v47 = vpack.c.b16 %v42, %v41
    %v48 = vpack.c.b16 %v44, %v43
    %v51 = vunpack.c.l.b16 %v27
    %v52 = vunpack.c.l.b16 %v28
    %v53 = vpack.c.b16 %v52, %v51
    %vm54 = vcmask 261120
    %v56 = vsel %vm54, %v45, 0
    %v59 = vsel %vm54, %v46, 0
    %v62 = vsel %vm54, %v47, 0
    %v65 = vsel %vm54, %v48, 0
    %v68 = vsel %vm54, %v53, 0
    %70 = vmatpush.bf16.xpose.msra.mxu0 0
    %71 = vmatpush.bf16.xpose.msra.mxu0 0
    %72 = vmatpush.bf16.xpose.msra.mxu0 0
    %73 = vmatpush.bf16.xpose.msra.mxu0 0
    %74 = vmatpush.bf16.xpose.msra.mxu0 0
    %75 = vmatpush.bf16.xpose.msra.mxu0 0
    %76 = vmatpush.bf16.xpose.msra.mxu0 0
    %77 = vmatpush.bf16.xpose.msra.mxu0 %v68
    %78 = vmatmul.bf16.gmra.mxu0 %v56
    %v79 = vpop.f32.mrf.mxu0
    %v80 = vadd.f32 0.0, %v79
    %v81 = vpop.f32.mrf.mxu0
    %v82 = vadd.f32 0.0, %v81
    %83 = vmatmul.bf16.gmra.mxu0 %v59
    %v84 = vpop.f32.mrf.mxu0
    %v85 = vadd.f32 0.0, %v84
    %v86 = vpop.f32.mrf.mxu0
    %v87 = vadd.f32 0.0, %v86
    %88 = vmatmul.bf16.gmra.mxu0 %v62
    %v89 = vpop.f32.mrf.mxu0
    %v90 = vadd.f32 0.0, %v89
    %v91 = vpop.f32.mrf.mxu0
    %v92 = vadd.f32 0.0, %v91
    %93 = vmatmul.bf16.gmra.mxu0 %v65
    %v94 = vpop.f32.mrf.mxu0
    %v95 = vadd.f32 0.0, %v94
    %v96 = vpop.f32.mrf.mxu0
    %v97 = vadd.f32 0.0, %v96
    %98 = vdwg.mxu0
    %vm99 = vcmask 130048
    %v100 = vsel %vm99, %v80, -inf
    %v101 = vrot.slane %v100, 4
    %v102 = vmax.f32 %v100, %v101
    %v103 = vrot.slane %v102, 2
    %v104 = vmax.f32 %v102, %v103
    %v105 = vrot.slane %v104, 1
    %v106 = vmax.f32 %v104, %v105
    %v107 = vsel %vm99, %v82, -inf
    %v108 = vrot.slane %v107, 4
    %v109 = vmax.f32 %v107, %v108
    %v110 = vrot.slane %v109, 2
    %v111 = vmax.f32 %v109, %v110
    %v112 = vrot.slane %v111, 1
    %v113 = vmax.f32 %v111, %v112
    %v114 = vsel %vm99, %v85, -inf
    %v115 = vrot.slane %v114, 4
    %v116 = vmax.f32 %v114, %v115
    %v117 = vrot.slane %v116, 2
    %v118 = vmax.f32 %v116, %v117
    %v119 = vrot.slane %v118, 1
    %v120 = vmax.f32 %v118, %v119
    %v121 = vsel %vm99, %v87, -inf
    %v122 = vrot.slane %v121, 4
    %v123 = vmax.f32 %v121, %v122
    %v124 = vrot.slane %v123, 2
    %v125 = vmax.f32 %v123, %v124
    %v126 = vrot.slane %v125, 1
    %v127 = vmax.f32 %v125, %v126
    %v128 = vsel %vm99, %v90, -inf
    %v129 = vrot.slane %v128, 4
    %v130 = vmax.f32 %v128, %v129
    %v131 = vrot.slane %v130, 2
    %v132 = vmax.f32 %v130, %v131
    %v133 = vrot.slane %v132, 1
    %v134 = vmax.f32 %v132, %v133
    %v135 = vsel %vm99, %v92, -inf
    %v136 = vrot.slane %v135, 4
    %v137 = vmax.f32 %v135, %v136
    %v138 = vrot.slane %v137, 2
    %v139 = vmax.f32 %v137, %v138
    %v140 = vrot.slane %v139, 1
    %v141 = vmax.f32 %v139, %v140
    %v142 = vsel %vm99, %v95, -inf
    %v143 = vrot.slane %v142, 4
    %v144 = vmax.f32 %v142, %v143
    %v145 = vrot.slane %v144, 2
    %v146 = vmax.f32 %v144, %v145
    %v147 = vrot.slane %v146, 1
    %v148 = vmax.f32 %v146, %v147
    %v149 = vsel %vm99, %v97, -inf
    %v150 = vrot.slane %v149, 4
    %v151 = vmax.f32 %v149, %v150
    %v152 = vrot.slane %v151, 2
    %v153 = vmax.f32 %v151, %v152
    %v154 = vrot.slane %v153, 1
    %v155 = vmax.f32 %v153, %v154
    %vm164 = vcmask 1041409
    %v165 = vsel %vm164, %v113, %v106
    %vm166 = vcmask 1042434
    %v167 = vsel %vm166, %v120, %v165
    %vm168 = vcmask 1043459
    %v169 = vsel %vm168, %v127, %v167
    %vm170 = vcmask 1044484
    %v171 = vsel %vm170, %v134, %v169
    %vm172 = vcmask 1045509
    %v173 = vsel %vm172, %v141, %v171
    %vm174 = vcmask 1046534
    %v175 = vsel %vm174, %v148, %v173
    %vm176 = vcmask 1047559
    %v177 = vsel %vm176, %v155, %v175
    %v179 = vsel %vm99, %v177, 0.0
    %180 = vadd.xlane.f32.xlu0 %v179
    %v181 = vpop.xlane.xlu0 %180
    %182 = vmax.xlane.f32.xlu0 %v100
    %v183 = vpop.xlane.xlu0 %182
    %184 = vmax.xlane.f32.xlu0 %v107
    %v185 = vpop.xlane.xlu0 %184
    %186 = vmax.xlane.f32.xlu0 %v114
    %v187 = vpop.xlane.xlu0 %186
    %188 = vmax.xlane.f32.xlu0 %v121
    %v189 = vpop.xlane.xlu0 %188
    %190 = vmax.xlane.f32.xlu0 %v128
    %v191 = vpop.xlane.xlu0 %190
    %192 = vmax.xlane.f32.xlu0 %v135
    %v193 = vpop.xlane.xlu0 %192
    %194 = vmax.xlane.f32.xlu0 %v142
    %v195 = vpop.xlane.xlu0 %194
    %196 = vmax.xlane.f32.xlu0 %v149
    %v197 = vpop.xlane.xlu0 %196
    %v206 = vlaneseq
    %v207 = vand.u32 %v206, 127
    %v208 = vperm.slane %v183, %v207
    %v209 = vperm.slane %v185, %v207
    %v210 = vperm.slane %v187, %v207
    %v211 = vperm.slane %v189, %v207
    %v212 = vperm.slane %v191, %v207
    %v213 = vperm.slane %v193, %v207
    %v214 = vperm.slane %v195, %v207
    %v215 = vperm.slane %v197, %v207
    %v216 = vsel %vm164, %v209, %v208
    %v217 = vsel %vm166, %v210, %v216
    %v218 = vsel %vm168, %v211, %v217
    %v219 = vsel %vm170, %v212, %v218
    %v220 = vsel %vm172, %v213, %v219
    %v221 = vsel %vm174, %v214, %v220
    %v222 = vsel %vm176, %v215, %v221
    %vm224 = vcmask 64512
    %v225 = vsel %vm224, %v222, 0.0
    %226 = vadd.xlane.f32.xlu0 %v225
    %v227 = vpop.xlane.xlu0 %226
    %v228 = vld [vmem:[%s2 + $0x8] sm:$0xf]
    %v229 = vld [vmem:[%s2 + $0xc] sm:$0xf]
    %v232 = vunpack.c.l.b16 %v228
    %v233 = vunpack.c.l.b16 %v229
    %v234 = vpack.c.b16 %v233, %v232
    %v236 = vsel %vm54, %v234, 0
    %238 = vmatpush.bf16.xpose.msra.mxu0 0
    %239 = vmatpush.bf16.xpose.msra.mxu0 0
    %240 = vmatpush.bf16.xpose.msra.mxu0 0
    %241 = vmatpush.bf16.xpose.msra.mxu0 0
    %242 = vmatpush.bf16.xpose.msra.mxu0 0
    %243 = vmatpush.bf16.xpose.msra.mxu0 0
    %244 = vmatpush.bf16.xpose.msra.mxu0 0
    %245 = vmatpush.bf16.xpose.msra.mxu0 %v236
    %246 = vmatmul.bf16.gmra.mxu0 %v56
    %v247 = vpop.f32.mrf.mxu0
    %v248 = vadd.f32 0.0, %v247
    %v249 = vpop.f32.mrf.mxu0
    %v250 = vadd.f32 0.0, %v249
    %251 = vmatmul.bf16.gmra.mxu0 %v59
    %v252 = vpop.f32.mrf.mxu0
    %v253 = vadd.f32 0.0, %v252
    %v254 = vpop.f32.mrf.mxu0
    %v255 = vadd.f32 0.0, %v254
    %256 = vmatmul.bf16.gmra.mxu0 %v62
    %v257 = vpop.f32.mrf.mxu0
    %v258 = vadd.f32 0.0, %v257
    %v259 = vpop.f32.mrf.mxu0
    %v260 = vadd.f32 0.0, %v259
    %261 = vmatmul.bf16.gmra.mxu0 %v65
    %v262 = vpop.f32.mrf.mxu0
    %v263 = vadd.f32 0.0, %v262
    %v264 = vpop.f32.mrf.mxu0
    %v265 = vadd.f32 0.0, %v264
    %266 = vdwg.mxu0
    %v267 = vsel %vm99, %v248, -inf
    %v268 = vrot.slane %v267, 4
    %v269 = vmax.f32 %v267, %v268
    %v270 = vrot.slane %v269, 2
    %v271 = vmax.f32 %v269, %v270
    %v272 = vrot.slane %v271, 1
    %v273 = vmax.f32 %v271, %v272
    %v274 = vsel %vm99, %v250, -inf
    %v275 = vrot.slane %v274, 4
    %v276 = vmax.f32 %v274, %v275
    %v277 = vrot.slane %v276, 2
    %v278 = vmax.f32 %v276, %v277
    %v279 = vrot.slane %v278, 1
    %v280 = vmax.f32 %v278, %v279
    %v281 = vsel %vm99, %v253, -inf
    %v282 = vrot.slane %v281, 4
    %v283 = vmax.f32 %v281, %v282
    %v284 = vrot.slane %v283, 2
    %v285 = vmax.f32 %v283, %v284
    %v286 = vrot.slane %v285, 1
    %v287 = vmax.f32 %v285, %v286
    %v288 = vsel %vm99, %v255, -inf
    %v289 = vrot.slane %v288, 4
    %v290 = vmax.f32 %v288, %v289
    %v291 = vrot.slane %v290, 2
    %v292 = vmax.f32 %v290, %v291
    %v293 = vrot.slane %v292, 1
    %v294 = vmax.f32 %v292, %v293
    %v295 = vsel %vm99, %v258, -inf
    %v296 = vrot.slane %v295, 4
    %v297 = vmax.f32 %v295, %v296
    %v298 = vrot.slane %v297, 2
    %v299 = vmax.f32 %v297, %v298
    %v300 = vrot.slane %v299, 1
    %v301 = vmax.f32 %v299, %v300
    %v302 = vsel %vm99, %v260, -inf
    %v303 = vrot.slane %v302, 4
    %v304 = vmax.f32 %v302, %v303
    %v305 = vrot.slane %v304, 2
    %v306 = vmax.f32 %v304, %v305
    %v307 = vrot.slane %v306, 1
    %v308 = vmax.f32 %v306, %v307
    %v309 = vsel %vm99, %v263, -inf
    %v310 = vrot.slane %v309, 4
    %v311 = vmax.f32 %v309, %v310
    %v312 = vrot.slane %v311, 2
    %v313 = vmax.f32 %v311, %v312
    %v314 = vrot.slane %v313, 1
    %v315 = vmax.f32 %v313, %v314
    %v316 = vsel %vm99, %v265, -inf
    %v317 = vrot.slane %v316, 4
    %v318 = vmax.f32 %v316, %v317
    %v319 = vrot.slane %v318, 2
    %v320 = vmax.f32 %v318, %v319
    %v321 = vrot.slane %v320, 1
    %v322 = vmax.f32 %v320, %v321
    %v331 = vsel %vm164, %v280, %v273
    %v332 = vsel %vm166, %v287, %v331
    %v333 = vsel %vm168, %v294, %v332
    %v334 = vsel %vm170, %v301, %v333
    %v335 = vsel %vm172, %v308, %v334
    %v336 = vsel %vm174, %v315, %v335
    %v337 = vsel %vm176, %v322, %v336
    %v339 = vsel %vm99, %v337, 0.0
    %340 = vadd.xlane.f32.xlu0 %v339
    %v341 = vpop.xlane.xlu0 %340
    %342 = vmax.xlane.f32.xlu0 %v267
    %v343 = vpop.xlane.xlu0 %342
    %344 = vmax.xlane.f32.xlu0 %v274
    %v345 = vpop.xlane.xlu0 %344
    %346 = vmax.xlane.f32.xlu0 %v281
    %v347 = vpop.xlane.xlu0 %346
    %348 = vmax.xlane.f32.xlu0 %v288
    %v349 = vpop.xlane.xlu0 %348
    %350 = vmax.xlane.f32.xlu0 %v295
    %v351 = vpop.xlane.xlu0 %350
    %352 = vmax.xlane.f32.xlu0 %v302
    %v353 = vpop.xlane.xlu0 %352
    %354 = vmax.xlane.f32.xlu0 %v309
    %v355 = vpop.xlane.xlu0 %354
    %356 = vmax.xlane.f32.xlu0 %v316
    %v357 = vpop.xlane.xlu0 %356
    %v366 = vperm.slane %v343, %v207
    %v367 = vperm.slane %v345, %v207
    %v368 = vperm.slane %v347, %v207
    %v369 = vperm.slane %v349, %v207
    %v370 = vperm.slane %v351, %v207
    %v371 = vperm.slane %v353, %v207
    %v372 = vperm.slane %v355, %v207
    %v373 = vperm.slane %v357, %v207
    %v374 = vsel %vm164, %v367, %v366
    %v375 = vsel %vm166, %v368, %v374
    %v376 = vsel %vm168, %v369, %v375
    %v377 = vsel %vm170, %v370, %v376
    %v378 = vsel %vm172, %v371, %v377
    %v379 = vsel %vm174, %v372, %v378
    %v380 = vsel %vm176, %v373, %v379
    %v382 = vsel %vm224, %v380, 0.0
    %383 = vadd.xlane.f32.xlu0 %v382
    %v384 = vpop.xlane.xlu0 %383
    %v385 = vld [vmem:[%s2 + $0x10] sm:$0xf]
    %v386 = vld [vmem:[%s2 + $0x14] sm:$0xf]
    %v389 = vunpack.c.l.b16 %v385
    %v390 = vunpack.c.l.b16 %v386
    %v391 = vpack.c.b16 %v390, %v389
    %v393 = vsel %vm54, %v391, 0
    %395 = vmatpush.bf16.xpose.msra.mxu0 0
    %396 = vmatpush.bf16.xpose.msra.mxu0 0
    %397 = vmatpush.bf16.xpose.msra.mxu0 0
    %398 = vmatpush.bf16.xpose.msra.mxu0 0
    %399 = vmatpush.bf16.xpose.msra.mxu0 0
    %400 = vmatpush.bf16.xpose.msra.mxu0 0
    %401 = vmatpush.bf16.xpose.msra.mxu0 0
    %402 = vmatpush.bf16.xpose.msra.mxu0 %v393
    %403 = vmatmul.bf16.gmra.mxu0 %v56
    %v404 = vpop.f32.mrf.mxu0
    %v405 = vadd.f32 0.0, %v404
    %v406 = vpop.f32.mrf.mxu0
    %v407 = vadd.f32 0.0, %v406
    %408 = vmatmul.bf16.gmra.mxu0 %v59
    %v409 = vpop.f32.mrf.mxu0
    %v410 = vadd.f32 0.0, %v409
    %v411 = vpop.f32.mrf.mxu0
    %v412 = vadd.f32 0.0, %v411
    %413 = vmatmul.bf16.gmra.mxu0 %v62
    %v414 = vpop.f32.mrf.mxu0
    %v415 = vadd.f32 0.0, %v414
    %v416 = vpop.f32.mrf.mxu0
    %v417 = vadd.f32 0.0, %v416
    %418 = vmatmul.bf16.gmra.mxu0 %v65
    %v419 = vpop.f32.mrf.mxu0
    %v420 = vadd.f32 0.0, %v419
    %v421 = vpop.f32.mrf.mxu0
    %v422 = vadd.f32 0.0, %v421
    %423 = vdwg.mxu0
    %v424 = vsel %vm99, %v405, -inf
    %v425 = vrot.slane %v424, 4
    %v426 = vmax.f32 %v424, %v425
    %v427 = vrot.slane %v426, 2
    %v428 = vmax.f32 %v426, %v427
    %v429 = vrot.slane %v428, 1
    %v430 = vmax.f32 %v428, %v429
    %v431 = vsel %vm99, %v407, -inf
    %v432 = vrot.slane %v431, 4
    %v433 = vmax.f32 %v431, %v432
    %v434 = vrot.slane %v433, 2
    %v435 = vmax.f32 %v433, %v434
    %v436 = vrot.slane %v435, 1
    %v437 = vmax.f32 %v435, %v436
    %v438 = vsel %vm99, %v410, -inf
    %v439 = vrot.slane %v438, 4
    %v440 = vmax.f32 %v438, %v439
    %v441 = vrot.slane %v440, 2
    %v442 = vmax.f32 %v440, %v441
    %v443 = vrot.slane %v442, 1
    %v444 = vmax.f32 %v442, %v443
    %v445 = vsel %vm99, %v412, -inf
    %v446 = vrot.slane %v445, 4
    %v447 = vmax.f32 %v445, %v446
    %v448 = vrot.slane %v447, 2
    %v449 = vmax.f32 %v447, %v448
    %v450 = vrot.slane %v449, 1
    %v451 = vmax.f32 %v449, %v450
    %v452 = vsel %vm99, %v415, -inf
    %v453 = vrot.slane %v452, 4
    %v454 = vmax.f32 %v452, %v453
    %v455 = vrot.slane %v454, 2
    %v456 = vmax.f32 %v454, %v455
    %v457 = vrot.slane %v456, 1
    %v458 = vmax.f32 %v456, %v457
    %v459 = vsel %vm99, %v417, -inf
    %v460 = vrot.slane %v459, 4
    %v461 = vmax.f32 %v459, %v460
    %v462 = vrot.slane %v461, 2
    %v463 = vmax.f32 %v461, %v462
    %v464 = vrot.slane %v463, 1
    %v465 = vmax.f32 %v463, %v464
    %v466 = vsel %vm99, %v420, -inf
    %v467 = vrot.slane %v466, 4
    %v468 = vmax.f32 %v466, %v467
    %v469 = vrot.slane %v468, 2
    %v470 = vmax.f32 %v468, %v469
    %v471 = vrot.slane %v470, 1
    %v472 = vmax.f32 %v470, %v471
    %v473 = vsel %vm99, %v422, -inf
    %v474 = vrot.slane %v473, 4
    %v475 = vmax.f32 %v473, %v474
    %v476 = vrot.slane %v475, 2
    %v477 = vmax.f32 %v475, %v476
    %v478 = vrot.slane %v477, 1
    %v479 = vmax.f32 %v477, %v478
    %v488 = vsel %vm164, %v437, %v430
    %v489 = vsel %vm166, %v444, %v488
    %v490 = vsel %vm168, %v451, %v489
    %v491 = vsel %vm170, %v458, %v490
    %v492 = vsel %vm172, %v465, %v491
    %v493 = vsel %vm174, %v472, %v492
    %v494 = vsel %vm176, %v479, %v493
    %v496 = vsel %vm99, %v494, 0.0
    %497 = vadd.xlane.f32.xlu0 %v496
    %v498 = vpop.xlane.xlu0 %497
    %499 = vmax.xlane.f32.xlu0 %v424
    %v500 = vpop.xlane.xlu0 %499
    %501 = vmax.xlane.f32.xlu0 %v431
    %v502 = vpop.xlane.xlu0 %501
    %503 = vmax.xlane.f32.xlu0 %v438
    %v504 = vpop.xlane.xlu0 %503
    %505 = vmax.xlane.f32.xlu0 %v445
    %v506 = vpop.xlane.xlu0 %505
    %507 = vmax.xlane.f32.xlu0 %v452
    %v508 = vpop.xlane.xlu0 %507
    %509 = vmax.xlane.f32.xlu0 %v459
    %v510 = vpop.xlane.xlu0 %509
    %511 = vmax.xlane.f32.xlu0 %v466
    %v512 = vpop.xlane.xlu0 %511
    %513 = vmax.xlane.f32.xlu0 %v473
    %v514 = vpop.xlane.xlu0 %513
    %v523 = vperm.slane %v500, %v207
    %v524 = vperm.slane %v502, %v207
    %v525 = vperm.slane %v504, %v207
    %v526 = vperm.slane %v506, %v207
    %v527 = vperm.slane %v508, %v207
    %v528 = vperm.slane %v510, %v207
    %v529 = vperm.slane %v512, %v207
    %v530 = vperm.slane %v514, %v207
    %v531 = vsel %vm164, %v524, %v523
    %v532 = vsel %vm166, %v525, %v531
    %v533 = vsel %vm168, %v526, %v532
    %v534 = vsel %vm170, %v527, %v533
    %v535 = vsel %vm172, %v528, %v534
    %v536 = vsel %vm174, %v529, %v535
    %v537 = vsel %vm176, %v530, %v536
    %v539 = vsel %vm224, %v537, 0.0
    %540 = vadd.xlane.f32.xlu0 %v539
    %v541 = vpop.xlane.xlu0 %540
    %v542 = vld [vmem:[%s2 + $0x18] sm:$0xf]
    %v543 = vld [vmem:[%s2 + $0x1c] sm:$0xf]
    %v546 = vunpack.c.l.b16 %v542
    %v547 = vunpack.c.l.b16 %v543
    %v548 = vpack.c.b16 %v547, %v546
    %v550 = vsel %vm54, %v548, 0
    %552 = vmatpush.bf16.xpose.msra.mxu0 0
    %553 = vmatpush.bf16.xpose.msra.mxu0 0
    %554 = vmatpush.bf16.xpose.msra.mxu0 0
    %555 = vmatpush.bf16.xpose.msra.mxu0 0
    %556 = vmatpush.bf16.xpose.msra.mxu0 0
    %557 = vmatpush.bf16.xpose.msra.mxu0 0
    %558 = vmatpush.bf16.xpose.msra.mxu0 0
    %559 = vmatpush.bf16.xpose.msra.mxu0 %v550
    %560 = vmatmul.bf16.gmra.mxu0 %v56
    %v561 = vpop.f32.mrf.mxu0
    %v562 = vadd.f32 0.0, %v561
    %v563 = vpop.f32.mrf.mxu0
    %v564 = vadd.f32 0.0, %v563
    %565 = vmatmul.bf16.gmra.mxu0 %v59
    %v566 = vpop.f32.mrf.mxu0
    %v567 = vadd.f32 0.0, %v566
    %v568 = vpop.f32.mrf.mxu0
    %v569 = vadd.f32 0.0, %v568
    %570 = vmatmul.bf16.gmra.mxu0 %v62
    %v571 = vpop.f32.mrf.mxu0
    %v572 = vadd.f32 0.0, %v571
    %v573 = vpop.f32.mrf.mxu0
    %v574 = vadd.f32 0.0, %v573
    %575 = vmatmul.bf16.gmra.mxu0 %v65
    %v576 = vpop.f32.mrf.mxu0
    %v577 = vadd.f32 0.0, %v576
    %v578 = vpop.f32.mrf.mxu0
    %v579 = vadd.f32 0.0, %v578
    %580 = vdwg.mxu0
    %v581 = vsel %vm99, %v562, -inf
    %v582 = vrot.slane %v581, 4
    %v583 = vmax.f32 %v581, %v582
    %v584 = vrot.slane %v583, 2
    %v585 = vmax.f32 %v583, %v584
    %v586 = vrot.slane %v585, 1
    %v587 = vmax.f32 %v585, %v586
    %v588 = vsel %vm99, %v564, -inf
    %v589 = vrot.slane %v588, 4
    %v590 = vmax.f32 %v588, %v589
    %v591 = vrot.slane %v590, 2
    %v592 = vmax.f32 %v590, %v591
    %v593 = vrot.slane %v592, 1
    %v594 = vmax.f32 %v592, %v593
    %v595 = vsel %vm99, %v567, -inf
    %v596 = vrot.slane %v595, 4
    %v597 = vmax.f32 %v595, %v596
    %v598 = vrot.slane %v597, 2
    %v599 = vmax.f32 %v597, %v598
    %v600 = vrot.slane %v599, 1
    %v601 = vmax.f32 %v599, %v600
    %v602 = vsel %vm99, %v569, -inf
    %v603 = vrot.slane %v602, 4
    %v604 = vmax.f32 %v602, %v603
    %v605 = vrot.slane %v604, 2
    %v606 = vmax.f32 %v604, %v605
    %v607 = vrot.slane %v606, 1
    %v608 = vmax.f32 %v606, %v607
    %v609 = vsel %vm99, %v572, -inf
    %v610 = vrot.slane %v609, 4
    %v611 = vmax.f32 %v609, %v610
    %v612 = vrot.slane %v611, 2
    %v613 = vmax.f32 %v611, %v612
    %v614 = vrot.slane %v613, 1
    %v615 = vmax.f32 %v613, %v614
    %v616 = vsel %vm99, %v574, -inf
    %v617 = vrot.slane %v616, 4
    %v618 = vmax.f32 %v616, %v617
    %v619 = vrot.slane %v618, 2
    %v620 = vmax.f32 %v618, %v619
    %v621 = vrot.slane %v620, 1
    %v622 = vmax.f32 %v620, %v621
    %v623 = vsel %vm99, %v577, -inf
    %v624 = vrot.slane %v623, 4
    %v625 = vmax.f32 %v623, %v624
    %v626 = vrot.slane %v625, 2
    %v627 = vmax.f32 %v625, %v626
    %v628 = vrot.slane %v627, 1
    %v629 = vmax.f32 %v627, %v628
    %v630 = vsel %vm99, %v579, -inf
    %v631 = vrot.slane %v630, 4
    %v632 = vmax.f32 %v630, %v631
    %v633 = vrot.slane %v632, 2
    %v634 = vmax.f32 %v632, %v633
    %v635 = vrot.slane %v634, 1
    %v636 = vmax.f32 %v634, %v635
    %v645 = vsel %vm164, %v594, %v587
    %v646 = vsel %vm166, %v601, %v645
    %v647 = vsel %vm168, %v608, %v646
    %v648 = vsel %vm170, %v615, %v647
    %v649 = vsel %vm172, %v622, %v648
    %v650 = vsel %vm174, %v629, %v649
    %v651 = vsel %vm176, %v636, %v650
    %v653 = vsel %vm99, %v651, 0.0
    %654 = vadd.xlane.f32.xlu0 %v653
    %v655 = vpop.xlane.xlu0 %654
    %656 = vmax.xlane.f32.xlu0 %v581
    %v657 = vpop.xlane.xlu0 %656
    %658 = vmax.xlane.f32.xlu0 %v588
    %v659 = vpop.xlane.xlu0 %658
    %660 = vmax.xlane.f32.xlu0 %v595
    %v661 = vpop.xlane.xlu0 %660
    %662 = vmax.xlane.f32.xlu0 %v602
    %v663 = vpop.xlane.xlu0 %662
    %664 = vmax.xlane.f32.xlu0 %v609
    %v665 = vpop.xlane.xlu0 %664
    %666 = vmax.xlane.f32.xlu0 %v616
    %v667 = vpop.xlane.xlu0 %666
    %668 = vmax.xlane.f32.xlu0 %v623
    %v669 = vpop.xlane.xlu0 %668
    %670 = vmax.xlane.f32.xlu0 %v630
    %v671 = vpop.xlane.xlu0 %670
    %v680 = vperm.slane %v657, %v207
    %v681 = vperm.slane %v659, %v207
    %v682 = vperm.slane %v661, %v207
    %v683 = vperm.slane %v663, %v207
    %v684 = vperm.slane %v665, %v207
    %v685 = vperm.slane %v667, %v207
    %v686 = vperm.slane %v669, %v207
    %v687 = vperm.slane %v671, %v207
    %v688 = vsel %vm164, %v681, %v680
    %v689 = vsel %vm166, %v682, %v688
    %v690 = vsel %vm168, %v683, %v689
    %v691 = vsel %vm170, %v684, %v690
    %v692 = vsel %vm172, %v685, %v691
    %v693 = vsel %vm174, %v686, %v692
    %v694 = vsel %vm176, %v687, %v693
    %v696 = vsel %vm224, %v694, 0.0
    %697 = vadd.xlane.f32.xlu0 %v696
    %v698 = vpop.xlane.xlu0 %697
    %v699 = vld [vmem:[%s2 + $0x20] sm:$0xf]
    %v700 = vld [vmem:[%s2 + $0x24] sm:$0xf]
    %v703 = vunpack.c.l.b16 %v699
    %v704 = vunpack.c.l.b16 %v700
    %v705 = vpack.c.b16 %v704, %v703
    %v707 = vsel %vm54, %v705, 0
    %709 = vmatpush.bf16.xpose.msra.mxu0 0
    %710 = vmatpush.bf16.xpose.msra.mxu0 0
    %711 = vmatpush.bf16.xpose.msra.mxu0 0
    %712 = vmatpush.bf16.xpose.msra.mxu0 0
    %713 = vmatpush.bf16.xpose.msra.mxu0 0
    %714 = vmatpush.bf16.xpose.msra.mxu0 0
    %715 = vmatpush.bf16.xpose.msra.mxu0 0
    %716 = vmatpush.bf16.xpose.msra.mxu0 %v707
    %717 = vmatmul.bf16.gmra.mxu0 %v56
    %v718 = vpop.f32.mrf.mxu0
    %v719 = vadd.f32 0.0, %v718
    %v720 = vpop.f32.mrf.mxu0
    %v721 = vadd.f32 0.0, %v720
    %722 = vmatmul.bf16.gmra.mxu0 %v59
    %v723 = vpop.f32.mrf.mxu0
    %v724 = vadd.f32 0.0, %v723
    %v725 = vpop.f32.mrf.mxu0
    %v726 = vadd.f32 0.0, %v725
    %727 = vmatmul.bf16.gmra.mxu0 %v62
    %v728 = vpop.f32.mrf.mxu0
    %v729 = vadd.f32 0.0, %v728
    %v730 = vpop.f32.mrf.mxu0
    %v731 = vadd.f32 0.0, %v730
    %732 = vmatmul.bf16.gmra.mxu0 %v65
    %v733 = vpop.f32.mrf.mxu0
    %v734 = vadd.f32 0.0, %v733
    %v735 = vpop.f32.mrf.mxu0
    %v736 = vadd.f32 0.0, %v735
    %737 = vdwg.mxu0
    %v738 = vsel %vm99, %v719, -inf
    %v739 = vrot.slane %v738, 4
    %v740 = vmax.f32 %v738, %v739
    %v741 = vrot.slane %v740, 2
    %v742 = vmax.f32 %v740, %v741
    %v743 = vrot.slane %v742, 1
    %v744 = vmax.f32 %v742, %v743
    %v745 = vsel %vm99, %v721, -inf
    %v746 = vrot.slane %v745, 4
    %v747 = vmax.f32 %v745, %v746
    %v748 = vrot.slane %v747, 2
    %v749 = vmax.f32 %v747, %v748
    %v750 = vrot.slane %v749, 1
    %v751 = vmax.f32 %v749, %v750
    %v752 = vsel %vm99, %v724, -inf
    %v753 = vrot.slane %v752, 4
    %v754 = vmax.f32 %v752, %v753
    %v755 = vrot.slane %v754, 2
    %v756 = vmax.f32 %v754, %v755
    %v757 = vrot.slane %v756, 1
    %v758 = vmax.f32 %v756, %v757
    %v759 = vsel %vm99, %v726, -inf
    %v760 = vrot.slane %v759, 4
    %v761 = vmax.f32 %v759, %v760
    %v762 = vrot.slane %v761, 2
    %v763 = vmax.f32 %v761, %v762
    %v764 = vrot.slane %v763, 1
    %v765 = vmax.f32 %v763, %v764
    %v766 = vsel %vm99, %v729, -inf
    %v767 = vrot.slane %v766, 4
    %v768 = vmax.f32 %v766, %v767
    %v769 = vrot.slane %v768, 2
    %v770 = vmax.f32 %v768, %v769
    %v771 = vrot.slane %v770, 1
    %v772 = vmax.f32 %v770, %v771
    %v773 = vsel %vm99, %v731, -inf
    %v774 = vrot.slane %v773, 4
    %v775 = vmax.f32 %v773, %v774
    %v776 = vrot.slane %v775, 2
    %v777 = vmax.f32 %v775, %v776
    %v778 = vrot.slane %v777, 1
    %v779 = vmax.f32 %v777, %v778
    %v780 = vsel %vm99, %v734, -inf
    %v781 = vrot.slane %v780, 4
    %v782 = vmax.f32 %v780, %v781
    %v783 = vrot.slane %v782, 2
    %v784 = vmax.f32 %v782, %v783
    %v785 = vrot.slane %v784, 1
    %v786 = vmax.f32 %v784, %v785
    %v787 = vsel %vm99, %v736, -inf
    %v788 = vrot.slane %v787, 4
    %v789 = vmax.f32 %v787, %v788
    %v790 = vrot.slane %v789, 2
    %v791 = vmax.f32 %v789, %v790
    %v792 = vrot.slane %v791, 1
    %v793 = vmax.f32 %v791, %v792
    %v802 = vsel %vm164, %v751, %v744
    %v803 = vsel %vm166, %v758, %v802
    %v804 = vsel %vm168, %v765, %v803
    %v805 = vsel %vm170, %v772, %v804
    %v806 = vsel %vm172, %v779, %v805
    %v807 = vsel %vm174, %v786, %v806
    %v808 = vsel %vm176, %v793, %v807
    %v810 = vsel %vm99, %v808, 0.0
    %811 = vadd.xlane.f32.xlu0 %v810
    %v812 = vpop.xlane.xlu0 %811
    %813 = vmax.xlane.f32.xlu0 %v738
    %v814 = vpop.xlane.xlu0 %813
    %815 = vmax.xlane.f32.xlu0 %v745
    %v816 = vpop.xlane.xlu0 %815
    %817 = vmax.xlane.f32.xlu0 %v752
    %v818 = vpop.xlane.xlu0 %817
    %819 = vmax.xlane.f32.xlu0 %v759
    %v820 = vpop.xlane.xlu0 %819
    %821 = vmax.xlane.f32.xlu0 %v766
    %v822 = vpop.xlane.xlu0 %821
    %823 = vmax.xlane.f32.xlu0 %v773
    %v824 = vpop.xlane.xlu0 %823
    %825 = vmax.xlane.f32.xlu0 %v780
    %v826 = vpop.xlane.xlu0 %825
    %827 = vmax.xlane.f32.xlu0 %v787
    %v828 = vpop.xlane.xlu0 %827
    %v837 = vperm.slane %v814, %v207
    %v838 = vperm.slane %v816, %v207
    %v839 = vperm.slane %v818, %v207
    %v840 = vperm.slane %v820, %v207
    %v841 = vperm.slane %v822, %v207
    %v842 = vperm.slane %v824, %v207
    %v843 = vperm.slane %v826, %v207
    %v844 = vperm.slane %v828, %v207
    %v845 = vsel %vm164, %v838, %v837
    %v846 = vsel %vm166, %v839, %v845
    %v847 = vsel %vm168, %v840, %v846
    %v848 = vsel %vm170, %v841, %v847
    %v849 = vsel %vm172, %v842, %v848
    %v850 = vsel %vm174, %v843, %v849
    %v851 = vsel %vm176, %v844, %v850
    %v853 = vsel %vm224, %v851, 0.0
    %854 = vadd.xlane.f32.xlu0 %v853
    %v855 = vpop.xlane.xlu0 %854
    %v856 = vld [vmem:[%s2 + $0x28] sm:$0xf]
    %v857 = vld [vmem:[%s2 + $0x2c] sm:$0xf]
    %v860 = vunpack.c.l.b16 %v856
    %v861 = vunpack.c.l.b16 %v857
    %v862 = vpack.c.b16 %v861, %v860
    %v864 = vsel %vm54, %v862, 0
    %866 = vmatpush.bf16.xpose.msra.mxu0 0
    %867 = vmatpush.bf16.xpose.msra.mxu0 0
    %868 = vmatpush.bf16.xpose.msra.mxu0 0
    %869 = vmatpush.bf16.xpose.msra.mxu0 0
    %870 = vmatpush.bf16.xpose.msra.mxu0 0
    %871 = vmatpush.bf16.xpose.msra.mxu0 0
    %872 = vmatpush.bf16.xpose.msra.mxu0 0
    %873 = vmatpush.bf16.xpose.msra.mxu0 %v864
    %874 = vmatmul.bf16.gmra.mxu0 %v56
    %v875 = vpop.f32.mrf.mxu0
    %v876 = vadd.f32 0.0, %v875
    %v877 = vpop.f32.mrf.mxu0
    %v878 = vadd.f32 0.0, %v877
    %879 = vmatmul.bf16.gmra.mxu0 %v59
    %v880 = vpop.f32.mrf.mxu0
    %v881 = vadd.f32 0.0, %v880
    %v882 = vpop.f32.mrf.mxu0
    %v883 = vadd.f32 0.0, %v882
    %884 = vmatmul.bf16.gmra.mxu0 %v62
    %v885 = vpop.f32.mrf.mxu0
    %v886 = vadd.f32 0.0, %v885
    %v887 = vpop.f32.mrf.mxu0
    %v888 = vadd.f32 0.0, %v887
    %889 = vmatmul.bf16.gmra.mxu0 %v65
    %v890 = vpop.f32.mrf.mxu0
    %v891 = vadd.f32 0.0, %v890
    %v892 = vpop.f32.mrf.mxu0
    %v893 = vadd.f32 0.0, %v892
    %894 = vdwg.mxu0
    %v895 = vsel %vm99, %v876, -inf
    %v896 = vrot.slane %v895, 4
    %v897 = vmax.f32 %v895, %v896
    %v898 = vrot.slane %v897, 2
    %v899 = vmax.f32 %v897, %v898
    %v900 = vrot.slane %v899, 1
    %v901 = vmax.f32 %v899, %v900
    %v902 = vsel %vm99, %v878, -inf
    %v903 = vrot.slane %v902, 4
    %v904 = vmax.f32 %v902, %v903
    %v905 = vrot.slane %v904, 2
    %v906 = vmax.f32 %v904, %v905
    %v907 = vrot.slane %v906, 1
    %v908 = vmax.f32 %v906, %v907
    %v909 = vsel %vm99, %v881, -inf
    %v910 = vrot.slane %v909, 4
    %v911 = vmax.f32 %v909, %v910
    %v912 = vrot.slane %v911, 2
    %v913 = vmax.f32 %v911, %v912
    %v914 = vrot.slane %v913, 1
    %v915 = vmax.f32 %v913, %v914
    %v916 = vsel %vm99, %v883, -inf
    %v917 = vrot.slane %v916, 4
    %v918 = vmax.f32 %v916, %v917
    %v919 = vrot.slane %v918, 2
    %v920 = vmax.f32 %v918, %v919
    %v921 = vrot.slane %v920, 1
    %v922 = vmax.f32 %v920, %v921
    %v923 = vsel %vm99, %v886, -inf
    %v924 = vrot.slane %v923, 4
    %v925 = vmax.f32 %v923, %v924
    %v926 = vrot.slane %v925, 2
    %v927 = vmax.f32 %v925, %v926
    %v928 = vrot.slane %v927, 1
    %v929 = vmax.f32 %v927, %v928
    %v930 = vsel %vm99, %v888, -inf
    %v931 = vrot.slane %v930, 4
    %v932 = vmax.f32 %v930, %v931
    %v933 = vrot.slane %v932, 2
    %v934 = vmax.f32 %v932, %v933
    %v935 = vrot.slane %v934, 1
    %v936 = vmax.f32 %v934, %v935
    %v937 = vsel %vm99, %v891, -inf
    %v938 = vrot.slane %v937, 4
    %v939 = vmax.f32 %v937, %v938
    %v940 = vrot.slane %v939, 2
    %v941 = vmax.f32 %v939, %v940
    %v942 = vrot.slane %v941, 1
    %v943 = vmax.f32 %v941, %v942
    %v944 = vsel %vm99, %v893, -inf
    %v945 = vrot.slane %v944, 4
    %v946 = vmax.f32 %v944, %v945
    %v947 = vrot.slane %v946, 2
    %v948 = vmax.f32 %v946, %v947
    %v949 = vrot.slane %v948, 1
    %v950 = vmax.f32 %v948, %v949
    %v959 = vsel %vm164, %v908, %v901
    %v960 = vsel %vm166, %v915, %v959
    %v961 = vsel %vm168, %v922, %v960
    %v962 = vsel %vm170, %v929, %v961
    %v963 = vsel %vm172, %v936, %v962
    %v964 = vsel %vm174, %v943, %v963
    %v965 = vsel %vm176, %v950, %v964
    %v967 = vsel %vm99, %v965, 0.0
    %968 = vadd.xlane.f32.xlu0 %v967
    %v969 = vpop.xlane.xlu0 %968
    %970 = vmax.xlane.f32.xlu0 %v895
    %v971 = vpop.xlane.xlu0 %970
    %972 = vmax.xlane.f32.xlu0 %v902
    %v973 = vpop.xlane.xlu0 %972
    %974 = vmax.xlane.f32.xlu0 %v909
    %v975 = vpop.xlane.xlu0 %974
    %976 = vmax.xlane.f32.xlu0 %v916
    %v977 = vpop.xlane.xlu0 %976
    %978 = vmax.xlane.f32.xlu0 %v923
    %v979 = vpop.xlane.xlu0 %978
    %980 = vmax.xlane.f32.xlu0 %v930
    %v981 = vpop.xlane.xlu0 %980
    %982 = vmax.xlane.f32.xlu0 %v937
    %v983 = vpop.xlane.xlu0 %982
    %984 = vmax.xlane.f32.xlu0 %v944
    %v985 = vpop.xlane.xlu0 %984
    %v994 = vperm.slane %v971, %v207
    %v995 = vperm.slane %v973, %v207
    %v996 = vperm.slane %v975, %v207
    %v997 = vperm.slane %v977, %v207
    %v998 = vperm.slane %v979, %v207
    %v999 = vperm.slane %v981, %v207
    %v1000 = vperm.slane %v983, %v207
    %v1001 = vperm.slane %v985, %v207
    %v1002 = vsel %vm164, %v995, %v994
    %v1003 = vsel %vm166, %v996, %v1002
    %v1004 = vsel %vm168, %v997, %v1003
    %v1005 = vsel %vm170, %v998, %v1004
    %v1006 = vsel %vm172, %v999, %v1005
    %v1007 = vsel %vm174, %v1000, %v1006
    %v1008 = vsel %vm176, %v1001, %v1007
    %v1010 = vsel %vm224, %v1008, 0.0
    %1011 = vadd.xlane.f32.xlu0 %v1010
    %v1012 = vpop.xlane.xlu0 %1011
    %v1013 = vld [vmem:[%s2 + $0x30] sm:$0xf]
    %v1014 = vld [vmem:[%s2 + $0x34] sm:$0xf]
    %v1017 = vunpack.c.l.b16 %v1013
    %v1018 = vunpack.c.l.b16 %v1014
    %v1019 = vpack.c.b16 %v1018, %v1017
    %v1021 = vsel %vm54, %v1019, 0
    %1023 = vmatpush.bf16.xpose.msra.mxu0 0
    %1024 = vmatpush.bf16.xpose.msra.mxu0 0
    %1025 = vmatpush.bf16.xpose.msra.mxu0 0
    %1026 = vmatpush.bf16.xpose.msra.mxu0 0
    %1027 = vmatpush.bf16.xpose.msra.mxu0 0
    %1028 = vmatpush.bf16.xpose.msra.mxu0 0
    %1029 = vmatpush.bf16.xpose.msra.mxu0 0
    %1030 = vmatpush.bf16.xpose.msra.mxu0 %v1021
    %1031 = vmatmul.bf16.gmra.mxu0 %v56
    %v1032 = vpop.f32.mrf.mxu0
    %v1033 = vadd.f32 0.0, %v1032
    %v1034 = vpop.f32.mrf.mxu0
    %v1035 = vadd.f32 0.0, %v1034
    %1036 = vmatmul.bf16.gmra.mxu0 %v59
    %v1037 = vpop.f32.mrf.mxu0
    %v1038 = vadd.f32 0.0, %v1037
    %v1039 = vpop.f32.mrf.mxu0
    %v1040 = vadd.f32 0.0, %v1039
    %1041 = vmatmul.bf16.gmra.mxu0 %v62
    %v1042 = vpop.f32.mrf.mxu0
    %v1043 = vadd.f32 0.0, %v1042
    %v1044 = vpop.f32.mrf.mxu0
    %v1045 = vadd.f32 0.0, %v1044
    %1046 = vmatmul.bf16.gmra.mxu0 %v65
    %v1047 = vpop.f32.mrf.mxu0
    %v1048 = vadd.f32 0.0, %v1047
    %v1049 = vpop.f32.mrf.mxu0
    %v1050 = vadd.f32 0.0, %v1049
    %1051 = vdwg.mxu0
    %v1052 = vsel %vm99, %v1033, -inf
    %v1053 = vrot.slane %v1052, 4
    %v1054 = vmax.f32 %v1052, %v1053
    %v1055 = vrot.slane %v1054, 2
    %v1056 = vmax.f32 %v1054, %v1055
    %v1057 = vrot.slane %v1056, 1
    %v1058 = vmax.f32 %v1056, %v1057
    %v1059 = vsel %vm99, %v1035, -inf
    %v1060 = vrot.slane %v1059, 4
    %v1061 = vmax.f32 %v1059, %v1060
    %v1062 = vrot.slane %v1061, 2
    %v1063 = vmax.f32 %v1061, %v1062
    %v1064 = vrot.slane %v1063, 1
    %v1065 = vmax.f32 %v1063, %v1064
    %v1066 = vsel %vm99, %v1038, -inf
    %v1067 = vrot.slane %v1066, 4
    %v1068 = vmax.f32 %v1066, %v1067
    %v1069 = vrot.slane %v1068, 2
    %v1070 = vmax.f32 %v1068, %v1069
    %v1071 = vrot.slane %v1070, 1
    %v1072 = vmax.f32 %v1070, %v1071
    %v1073 = vsel %vm99, %v1040, -inf
    %v1074 = vrot.slane %v1073, 4
    %v1075 = vmax.f32 %v1073, %v1074
    %v1076 = vrot.slane %v1075, 2
    %v1077 = vmax.f32 %v1075, %v1076
    %v1078 = vrot.slane %v1077, 1
    %v1079 = vmax.f32 %v1077, %v1078
    %v1080 = vsel %vm99, %v1043, -inf
    %v1081 = vrot.slane %v1080, 4
    %v1082 = vmax.f32 %v1080, %v1081
    %v1083 = vrot.slane %v1082, 2
    %v1084 = vmax.f32 %v1082, %v1083
    %v1085 = vrot.slane %v1084, 1
    %v1086 = vmax.f32 %v1084, %v1085
    %v1087 = vsel %vm99, %v1045, -inf
    %v1088 = vrot.slane %v1087, 4
    %v1089 = vmax.f32 %v1087, %v1088
    %v1090 = vrot.slane %v1089, 2
    %v1091 = vmax.f32 %v1089, %v1090
    %v1092 = vrot.slane %v1091, 1
    %v1093 = vmax.f32 %v1091, %v1092
    %v1094 = vsel %vm99, %v1048, -inf
    %v1095 = vrot.slane %v1094, 4
    %v1096 = vmax.f32 %v1094, %v1095
    %v1097 = vrot.slane %v1096, 2
    %v1098 = vmax.f32 %v1096, %v1097
    %v1099 = vrot.slane %v1098, 1
    %v1100 = vmax.f32 %v1098, %v1099
    %v1101 = vsel %vm99, %v1050, -inf
    %v1102 = vrot.slane %v1101, 4
    %v1103 = vmax.f32 %v1101, %v1102
    %v1104 = vrot.slane %v1103, 2
    %v1105 = vmax.f32 %v1103, %v1104
    %v1106 = vrot.slane %v1105, 1
    %v1107 = vmax.f32 %v1105, %v1106
    %v1116 = vsel %vm164, %v1065, %v1058
    %v1117 = vsel %vm166, %v1072, %v1116
    %v1118 = vsel %vm168, %v1079, %v1117
    %v1119 = vsel %vm170, %v1086, %v1118
    %v1120 = vsel %vm172, %v1093, %v1119
    %v1121 = vsel %vm174, %v1100, %v1120
    %v1122 = vsel %vm176, %v1107, %v1121
    %v1124 = vsel %vm99, %v1122, 0.0
    %1125 = vadd.xlane.f32.xlu0 %v1124
    %v1126 = vpop.xlane.xlu0 %1125
    %1127 = vmax.xlane.f32.xlu0 %v1052
    %v1128 = vpop.xlane.xlu0 %1127
    %1129 = vmax.xlane.f32.xlu0 %v1059
    %v1130 = vpop.xlane.xlu0 %1129
    %1131 = vmax.xlane.f32.xlu0 %v1066
    %v1132 = vpop.xlane.xlu0 %1131
    %1133 = vmax.xlane.f32.xlu0 %v1073
    %v1134 = vpop.xlane.xlu0 %1133
    %1135 = vmax.xlane.f32.xlu0 %v1080
    %v1136 = vpop.xlane.xlu0 %1135
    %1137 = vmax.xlane.f32.xlu0 %v1087
    %v1138 = vpop.xlane.xlu0 %1137
    %1139 = vmax.xlane.f32.xlu0 %v1094
    %v1140 = vpop.xlane.xlu0 %1139
    %1141 = vmax.xlane.f32.xlu0 %v1101
    %v1142 = vpop.xlane.xlu0 %1141
    %v1151 = vperm.slane %v1128, %v207
    %v1152 = vperm.slane %v1130, %v207
    %v1153 = vperm.slane %v1132, %v207
    %v1154 = vperm.slane %v1134, %v207
    %v1155 = vperm.slane %v1136, %v207
    %v1156 = vperm.slane %v1138, %v207
    %v1157 = vperm.slane %v1140, %v207
    %v1158 = vperm.slane %v1142, %v207
    %v1159 = vsel %vm164, %v1152, %v1151
    %v1160 = vsel %vm166, %v1153, %v1159
    %v1161 = vsel %vm168, %v1154, %v1160
    %v1162 = vsel %vm170, %v1155, %v1161
    %v1163 = vsel %vm172, %v1156, %v1162
    %v1164 = vsel %vm174, %v1157, %v1163
    %v1165 = vsel %vm176, %v1158, %v1164
    %v1167 = vsel %vm224, %v1165, 0.0
    %1168 = vadd.xlane.f32.xlu0 %v1167
    %v1169 = vpop.xlane.xlu0 %1168
    %v1170 = vld [vmem:[%s2 + $0x38] sm:$0xf]
    %v1171 = vld [vmem:[%s2 + $0x3c] sm:$0xf]
    %v1174 = vunpack.c.l.b16 %v1170
    %v1175 = vunpack.c.l.b16 %v1171
    %v1176 = vpack.c.b16 %v1175, %v1174
    %v1178 = vsel %vm54, %v1176, 0
    %1180 = vmatpush.bf16.xpose.msra.mxu0 0
    %1181 = vmatpush.bf16.xpose.msra.mxu0 0
    %1182 = vmatpush.bf16.xpose.msra.mxu0 0
    %1183 = vmatpush.bf16.xpose.msra.mxu0 0
    %1184 = vmatpush.bf16.xpose.msra.mxu0 0
    %1185 = vmatpush.bf16.xpose.msra.mxu0 0
    %1186 = vmatpush.bf16.xpose.msra.mxu0 0
    %1187 = vmatpush.bf16.xpose.msra.mxu0 %v1178
    %1188 = vmatmul.bf16.gmra.mxu0 %v56
    %v1189 = vpop.f32.mrf.mxu0
    %v1190 = vadd.f32 0.0, %v1189
    %v1191 = vpop.f32.mrf.mxu0
    %v1192 = vadd.f32 0.0, %v1191
    %1193 = vmatmul.bf16.gmra.mxu0 %v59
    %v1194 = vpop.f32.mrf.mxu0
    %v1195 = vadd.f32 0.0, %v1194
    %v1196 = vpop.f32.mrf.mxu0
    %v1197 = vadd.f32 0.0, %v1196
    %1198 = vmatmul.bf16.gmra.mxu0 %v62
    %v1199 = vpop.f32.mrf.mxu0
    %v1200 = vadd.f32 0.0, %v1199
    %v1201 = vpop.f32.mrf.mxu0
    %v1202 = vadd.f32 0.0, %v1201
    %1203 = vmatmul.bf16.gmra.mxu0 %v65
    %v1204 = vpop.f32.mrf.mxu0
    %v1205 = vadd.f32 0.0, %v1204
    %v1206 = vpop.f32.mrf.mxu0
    %v1207 = vadd.f32 0.0, %v1206
    %1208 = vdwg.mxu0
    %v1209 = vsel %vm99, %v1190, -inf
    %v1210 = vrot.slane %v1209, 4
    %v1211 = vmax.f32 %v1209, %v1210
    %v1212 = vrot.slane %v1211, 2
    %v1213 = vmax.f32 %v1211, %v1212
    %v1214 = vrot.slane %v1213, 1
    %v1215 = vmax.f32 %v1213, %v1214
    %v1216 = vsel %vm99, %v1192, -inf
    %v1217 = vrot.slane %v1216, 4
    %v1218 = vmax.f32 %v1216, %v1217
    %v1219 = vrot.slane %v1218, 2
    %v1220 = vmax.f32 %v1218, %v1219
    %v1221 = vrot.slane %v1220, 1
    %v1222 = vmax.f32 %v1220, %v1221
    %v1223 = vsel %vm99, %v1195, -inf
    %v1224 = vrot.slane %v1223, 4
    %v1225 = vmax.f32 %v1223, %v1224
    %v1226 = vrot.slane %v1225, 2
    %v1227 = vmax.f32 %v1225, %v1226
    %v1228 = vrot.slane %v1227, 1
    %v1229 = vmax.f32 %v1227, %v1228
    %v1230 = vsel %vm99, %v1197, -inf
    %v1231 = vrot.slane %v1230, 4
    %v1232 = vmax.f32 %v1230, %v1231
    %v1233 = vrot.slane %v1232, 2
    %v1234 = vmax.f32 %v1232, %v1233
    %v1235 = vrot.slane %v1234, 1
    %v1236 = vmax.f32 %v1234, %v1235
    %v1237 = vsel %vm99, %v1200, -inf
    %v1238 = vrot.slane %v1237, 4
    %v1239 = vmax.f32 %v1237, %v1238
    %v1240 = vrot.slane %v1239, 2
    %v1241 = vmax.f32 %v1239, %v1240
    %v1242 = vrot.slane %v1241, 1
    %v1243 = vmax.f32 %v1241, %v1242
    %v1244 = vsel %vm99, %v1202, -inf
    %v1245 = vrot.slane %v1244, 4
    %v1246 = vmax.f32 %v1244, %v1245
    %v1247 = vrot.slane %v1246, 2
    %v1248 = vmax.f32 %v1246, %v1247
    %v1249 = vrot.slane %v1248, 1
    %v1250 = vmax.f32 %v1248, %v1249
    %v1251 = vsel %vm99, %v1205, -inf
    %v1252 = vrot.slane %v1251, 4
    %v1253 = vmax.f32 %v1251, %v1252
    %v1254 = vrot.slane %v1253, 2
    %v1255 = vmax.f32 %v1253, %v1254
    %v1256 = vrot.slane %v1255, 1
    %v1257 = vmax.f32 %v1255, %v1256
    %v1258 = vsel %vm99, %v1207, -inf
    %v1259 = vrot.slane %v1258, 4
    %v1260 = vmax.f32 %v1258, %v1259
    %v1261 = vrot.slane %v1260, 2
    %v1262 = vmax.f32 %v1260, %v1261
    %v1263 = vrot.slane %v1262, 1
    %v1264 = vmax.f32 %v1262, %v1263
    %v1273 = vsel %vm164, %v1222, %v1215
    %v1274 = vsel %vm166, %v1229, %v1273
    %v1275 = vsel %vm168, %v1236, %v1274
    %v1276 = vsel %vm170, %v1243, %v1275
    %v1277 = vsel %vm172, %v1250, %v1276
    %v1278 = vsel %vm174, %v1257, %v1277
    %v1279 = vsel %vm176, %v1264, %v1278
    %v1281 = vsel %vm99, %v1279, 0.0
    %1282 = vadd.xlane.f32.xlu0 %v1281
    %v1283 = vpop.xlane.xlu0 %1282
    %1284 = vmax.xlane.f32.xlu0 %v1209
    %v1285 = vpop.xlane.xlu0 %1284
    %1286 = vmax.xlane.f32.xlu0 %v1216
    %v1287 = vpop.xlane.xlu0 %1286
    %1288 = vmax.xlane.f32.xlu0 %v1223
    %v1289 = vpop.xlane.xlu0 %1288
    %1290 = vmax.xlane.f32.xlu0 %v1230
    %v1291 = vpop.xlane.xlu0 %1290
    %1292 = vmax.xlane.f32.xlu0 %v1237
    %v1293 = vpop.xlane.xlu0 %1292
    %1294 = vmax.xlane.f32.xlu0 %v1244
    %v1295 = vpop.xlane.xlu0 %1294
    %1296 = vmax.xlane.f32.xlu0 %v1251
    %v1297 = vpop.xlane.xlu0 %1296
    %1298 = vmax.xlane.f32.xlu0 %v1258
    %v1299 = vpop.xlane.xlu0 %1298
    %v1308 = vperm.slane %v1285, %v207
    %v1309 = vperm.slane %v1287, %v207
    %v1310 = vperm.slane %v1289, %v207
    %v1311 = vperm.slane %v1291, %v207
    %v1312 = vperm.slane %v1293, %v207
    %v1313 = vperm.slane %v1295, %v207
    %v1314 = vperm.slane %v1297, %v207
    %v1315 = vperm.slane %v1299, %v207
    %v1316 = vsel %vm164, %v1309, %v1308
    %v1317 = vsel %vm166, %v1310, %v1316
    %v1318 = vsel %vm168, %v1311, %v1317
    %v1319 = vsel %vm170, %v1312, %v1318
    %v1320 = vsel %vm172, %v1313, %v1319
    %v1321 = vsel %vm174, %v1314, %v1320
    %v1322 = vsel %vm176, %v1315, %v1321
    %v1324 = vsel %vm224, %v1322, 0.0
    %1325 = vadd.xlane.f32.xlu0 %v1324
    %v1326 = vpop.xlane.xlu0 %1325
    %vm1327 = vcmask 7168
    %v1328 = vsel %vm1327, %v181, %v341
    %vm1329 = vcmask 15360
    %v1330 = vsel %vm1329, %v1328, %v498
    %vm1331 = vcmask 23552
    %v1332 = vsel %vm1331, %v1330, %v655
    %vm1333 = vcmask 31744
    %v1334 = vsel %vm1333, %v1332, %v812
    %vm1335 = vcmask 39936
    %v1336 = vsel %vm1335, %v1334, %v969
    %vm1337 = vcmask 48128
    %v1338 = vsel %vm1337, %v1336, %v1126
    %vm1339 = vcmask 56320
    %v1340 = vsel %vm1339, %v1338, %v1283
    %v1341 = vstv %s18
    %v1342 = vmul.f32 %v1340, %v1341
    %1343 = vst.msk [vmem:[#allocation4] sm:$0xff] %vm224, %v1342
    %v1344 = vsel %vm1327, %v227, %v384
    %v1345 = vsel %vm1329, %v1344, %v541
    %v1346 = vsel %vm1331, %v1345, %v698
    %v1347 = vsel %vm1333, %v1346, %v855
    %v1348 = vsel %vm1335, %v1347, %v1012
    %v1349 = vsel %vm1337, %v1348, %v1169
    %v1350 = vsel %vm1339, %v1349, %v1326
    %v1351 = vmul.f32 %v1350, %v1341
    %1352 = vst.msk [vmem:[#allocation6] sm:$0xff] %vm224, %v1351
    // Predicated region
    $region10: #{tpu_custom_call.1} parent=1 // pred_check
      _
    $region11: #{tpu_custom_call.1} parent=1 // pred_check_branch
      %1354 = sbr.rel (0) target = $region13
    $region12: #{tpu_custom_call.1} parent=1 // pred_region
      %1356 = vsyncadd [#allocation5], 0
      %s1358 = sshll.u32 [#allocation4], 4
      %s1359 = int_to_ptr.vmem [resolvable:$true] %s1358
      %s1360 = sshll.u32 %s3, 4
      %s1361 = int_to_ptr.hbm [resolvable:$true] %s1360
      %1363 = dma.vmem_to_hbm [thread:$0]  %s1359, 128, %s1361, [#allocation5]
    $region13: #{tpu_custom_call.1} parent=1 // pred_fallthru
      _
    // Predicated region
    $region14: #{tpu_custom_call.1} parent=1 // pred_check
      _
    $region15: #{tpu_custom_call.1} parent=1 // pred_check_branch
      %1365 = sbr.rel (0) target = $region17
    $region16: #{tpu_custom_call.1} parent=1 // pred_region
      %1367 = vsyncadd [#allocation7], 0
      %s1369 = sshll.u32 [#allocation6], 4
      %s1370 = int_to_ptr.vmem [resolvable:$true] %s1369
      %s1371 = sshll.u32 %s4, 4
      %s1372 = int_to_ptr.hbm [resolvable:$true] %s1371
      %1374 = dma.vmem_to_hbm [thread:$0]  %s1370, 128, %s1372, [#allocation7]
    $region17: #{tpu_custom_call.1} parent=1 // pred_fallthru
      _
    // Predicated region
    $region18: #{tpu_custom_call.1} parent=1 // pred_check
      _
    $region19: #{tpu_custom_call.1} parent=1 // pred_check_branch
      %1376 = sbr.rel (0) target = $region21
    $region20: #{tpu_custom_call.1} parent=1 // pred_region
      %1378 = dma.done [#allocation5], 128
    $region21: #{tpu_custom_call.1} parent=1 // pred_fallthru
      _
    // Predicated region
    $region22: #{tpu_custom_call.1} parent=1 // pred_check
      _
    $region23: #{tpu_custom_call.1} parent=1 // pred_check_branch
      %1380 = sbr.rel (0) target = $region25
    $region24: #{tpu_custom_call.1} parent=1 // pred_region
      %1382 = dma.done [#allocation7], 128
    $region25: #{tpu_custom_call.1} parent=1 // pred_fallthru
      _
    %1383 = vsyncpa [#allocation5], 1
    %1384 = vsyncpa [#allocation7], 1

</llo_original>
